<compile_context>
chip_gen: v7x
topology: tpu7x:2x2x1
jax: 0.10.0
libtpu: 0.0.40
codegen_flags: <defaults>
</compile_context>

<pallas_src>
import functools

import jax
import jax.numpy as jnp
import numpy as np
from jax.experimental import pallas as pl
from jax.experimental.pallas import tpu as pltpu


# ----------------------------------------------------------------------------
# Kernel: one grid step == one batch tile.  Column layout of every activation
# is object-major within the tile: col = o * tile_b + bb  (bb = local batch).
#
#   x_ref   : (1, d_in, NBT)        bf16, NBT = n_obj * tile_b
#   w1u_ref : (n_unary*H, d_in)     bf16   fused unary first layer (transposed)
#   b1u_ref : (n_unary*H, 1)        f32
#   w2u_ref : (n_unary*H, 1)        f32    per-head second-layer weights, flat
#   b2u_ref : (n_unary, 1)          f32
#   w1ba_ref: (n_binary*H, d_in)    bf16   binary first layer, x1 half
#   w1bb_ref: (n_binary*H, d_in)    bf16   binary first layer, x2 half
#   b1b_ref : (n_binary*H, 1)       f32
#   w2b_ref : (n_binary*H, 1)       f32
#   b2b_ref : (n_binary, 1)         f32
#   ou_ref  : (1, n_unary, NBT)     f32
#   ob_ref  : (1, n_obj-1, n_binary, NBT) f32
# ----------------------------------------------------------------------------
def _readout_kernel(x_ref, w1u_ref, b1u_ref, w2u_ref, b2u_ref,
                    w1ba_ref, w1bb_ref, b1b_ref, w2b_ref, b2b_ref,
                    ou_ref, ob_ref, *,
                    n_unary, n_binary, d_hidden, n_shifts, tile_b):
    x = x_ref[0]                                   # (d_in, NBT) bf16
    nbt = x.shape[-1]

    # ---------------- unary heads: one fused matmul -----------------------
    hu = jnp.dot(w1u_ref[...], x,
                 preferred_element_type=jnp.float32)          # (n_u*H, NBT)
    hu = jnp.maximum(hu + b1u_ref[...], 0.0)
    su = hu * w2u_ref[...]                                    # f32 VPU
    ou = su.reshape(n_unary, d_hidden, nbt).sum(axis=1) + b2u_ref[...]
    ou_ref[0] = ou                                            # (n_u, NBT) lane-dense

    # ---------------- binary heads -----------------------------------------
    # First-layer contributions of the "left" and "right" pair arguments are
    # each computed ONCE on the raw x columns; the per-shift pair slab is
    # recovered with an in-VMEM lane rotation of `hb` (never touches HBM).
    ha = jnp.dot(w1ba_ref[...], x,
                 preferred_element_type=jnp.float32)          # (n_b*H, NBT)
    hb = jnp.dot(w1bb_ref[...], x,
                 preferred_element_type=jnp.float32)          # (n_b*H, NBT)
    b1b = b1b_ref[...]
    w2b = w2b_ref[...]
    b2b = b2b_ref[...]

    for s in range(1, n_shifts + 1):               # n_obj is static -> unrolled
        k = s * tile_b                             # object roll by -s == lane roll by -k
        hb_rot = jnp.concatenate([hb[:, k:], hb[:, :k]], axis=1)
        h = jnp.maximum(ha + hb_rot + b1b, 0.0)
        ob = (h * w2b).reshape(n_binary, d_hidden, nbt).sum(axis=1) + b2b
        ob_ref[0, s - 1] = ob                      # (n_b, NBT) lane-dense


def _fuse_head_weights(w1, b1, w2, b2):
    """(n_heads, Din, H) per-head params -> fused, kernel-friendly layouts."""
    n_heads, din, h = w1.shape
    w1_t = jnp.transpose(w1, (0, 2, 1)).reshape(n_heads * h, din)   # rows: head-major, then H
    b1_c = b1.reshape(n_heads * h, 1)
    w2_c = w2.reshape(n_heads * h, 1)
    b2_c = b2.reshape(n_heads, 1)
    return w1_t, b1_c, w2_c, b2_c


def _pick_tile_b(batch, n_obj, target_cols=512):
    """Largest divisor of `batch` keeping ~target_cols lanes per tile.

    Re-derive `target_cols` per generation if tiles ever approach VMEM limits
    (v7x has 64 MiB physical VMEM vs 128 MiB on v5e/v6e); at these head sizes a
    512-lane tile is only a few hundred KiB.
    """
    best = 1
    for t in range(1, batch + 1):
        if batch % t == 0 and t * n_obj <= max(target_cols, n_obj):
            best = t
    return best


# ----------------------------------------------------------------------------
# ReadoutNet forward (Pallas-backed)
# ----------------------------------------------------------------------------
def readout_forward(x, params):
    B, n_obj, d_in = x.shape
    uw1, ub1, uw2, ub2 = params["unary"]
    bw1, bb1, bw2, bb2 = params["binary"]
    n_unary, _, d_hidden = uw1.shape
    n_binary = bw1.shape[0]
    n_shifts = n_obj - 1

    tile_b = _pick_tile_b(B, n_obj)
    nb = B // tile_b
    nbt = n_obj * tile_b

    # Transposed, lane-dense activation slab: (nb, d_in, n_obj*tile_b),
    # columns object-major within each batch tile.  bf16 halves input traffic.
    x_t = x.reshape(nb, tile_b, n_obj, d_in)
    x_t = jnp.transpose(x_t, (0, 3, 2, 1)).reshape(nb, d_in, nbt)
    x_t = x_t.astype(jnp.bfloat16)

    w1u_t, b1u, w2u, b2u = _fuse_head_weights(uw1, ub1, uw2, ub2)
    w1b_t, b1b, w2b, b2b = _fuse_head_weights(bw1, bb1, bw2, bb2)
    w1ba_t = w1b_t[:, :d_in].astype(jnp.bfloat16)   # acts on pair arg 1
    w1bb_t = w1b_t[:, d_in:].astype(jnp.bfloat16)   # acts on pair arg 2
    w1u_t = w1u_t.astype(jnp.bfloat16)

    htu = n_unary * d_hidden
    htb = n_binary * d_hidden

    kernel = functools.partial(
        _readout_kernel, n_unary=n_unary, n_binary=n_binary,
        d_hidden=d_hidden, n_shifts=n_shifts, tile_b=tile_b)

    out_u, out_b = pl.pallas_call(
        kernel,
        out_shape=(
            jax.ShapeDtypeStruct((nb, n_unary, nbt), jnp.float32),
            jax.ShapeDtypeStruct((nb, n_shifts, n_binary, nbt), jnp.float32),
        ),
        grid_spec=pltpu.PrefetchScalarGridSpec(
            num_scalar_prefetch=0,
            grid=(nb,),
            in_specs=[
                pl.BlockSpec((1, d_in, nbt), lambda t: (t, 0, 0)),
                pl.BlockSpec((htu, d_in), lambda t: (0, 0)),
                pl.BlockSpec((htu, 1), lambda t: (0, 0)),
                pl.BlockSpec((htu, 1), lambda t: (0, 0)),
                pl.BlockSpec((n_unary, 1), lambda t: (0, 0)),
                pl.BlockSpec((htb, d_in), lambda t: (0, 0)),
                pl.BlockSpec((htb, d_in), lambda t: (0, 0)),
                pl.BlockSpec((htb, 1), lambda t: (0, 0)),
                pl.BlockSpec((htb, 1), lambda t: (0, 0)),
                pl.BlockSpec((n_binary, 1), lambda t: (0, 0)),
            ],
            out_specs=(
                pl.BlockSpec((1, n_unary, nbt), lambda t: (t, 0, 0)),
                pl.BlockSpec((1, n_shifts, n_binary, nbt), lambda t: (t, 0, 0, 0)),
            ),
        ),
        compiler_params=pltpu.CompilerParams(
            dimension_semantics=("parallel",)),   # batch tiles -> v7x dual-TC
    )(x_t, w1u_t, b1u, w2u, b2u, w1ba_t, w1bb_t, b1b, w2b, b2b)

    # Assemble (B, n_unary*n_obj + n_binary*P) in the PyTorch column order.
    # These permutes touch only the final (tiny, output-sized) arrays.
    yu = out_u.reshape(nb, n_unary, n_obj, tile_b)
    yu = jnp.transpose(yu, (0, 3, 1, 2)).reshape(B, n_unary * n_obj)
    yb = out_b.reshape(nb, n_shifts, n_binary, n_obj, tile_b)
    yb = jnp.transpose(yb, (0, 4, 2, 1, 3)).reshape(B, n_binary * n_shifts * n_obj)
    return jnp.concatenate([yu, yb], axis=1)


# ----------------------------------------------------------------------------
# Pure-JAX reference (spec structure: repeat/roll/concat + per-head MLP).
# Uses the same bf16 first-layer rounding as the kernel so 1e-3 tolerance is
# meaningful.
# ----------------------------------------------------------------------------
def readout_forward_ref(x, params):
    B, n_obj, d_in = x.shape
    uw1, ub1, uw2, ub2 = params["unary"]
    bw1, bb1, bw2, bb2 = params["binary"]
    n_unary = uw1.shape[0]
    n_binary = bw1.shape[0]

    def heads(xin, w1, b1, w2, b2):
        h = jnp.einsum("nd,hdk->hnk",
                       xin.astype(jnp.bfloat16), w1.astype(jnp.bfloat16),
                       preferred_element_type=jnp.float32)
        h = jnp.maximum(h + b1, 0.0)
        return jnp.sum(h * jnp.transpose(w2, (0, 2, 1)), axis=-1) + b2[:, :, 0]

    xu = x.reshape(B * n_obj, d_in)
    yu = heads(xu, uw1, ub1, uw2, ub2)                 # (n_unary, B*n_obj)
    yu = yu.reshape(n_unary, B, n_obj)
    yu = jnp.transpose(yu, (1, 0, 2)).reshape(B, -1)

    x1 = jnp.tile(x, (1, n_obj - 1, 1))
    x2 = jnp.concatenate([jnp.roll(x, -i, axis=1) for i in range(1, n_obj)],
                         axis=1)
    xp = jnp.concatenate([x1, x2], axis=-1)
    n_pairs = n_obj * (n_obj - 1)
    xb = xp.reshape(B * n_pairs, 2 * d_in)
    yb = heads(xb, bw1, bb1, bw2, bb2)                 # (n_binary, B*P)
    yb = yb.reshape(n_binary, B, n_pairs)
    yb = jnp.transpose(yb, (1, 0, 2)).reshape(B, -1)
    return jnp.concatenate([yu, yb], axis=1)


# ----------------------------------------------------------------------------
# Deterministic parameter construction (PyTorch-Linear-like uniform init)
# ----------------------------------------------------------------------------
def init_params(key, d_input, d_hidden, n_unary, n_binary):
    def make_heads(key, n_heads, din):
        k1, k2, k3, k4 = jax.random.split(key, 4)
        s1 = 1.0 / np.sqrt(din)
        s2 = 1.0 / np.sqrt(d_hidden)
        w1t = jax.random.uniform(k1, (n_heads, din, d_hidden),
                                 jnp.float32, -s1, s1)
        b1 = jax.random.uniform(k2, (n_heads, 1, d_hidden),
                                jnp.float32, -s1, s1)
        w2 = jax.random.uniform(k3, (n_heads, d_hidden, 1), jnp.float32, -s2, s2)
        b2 = jax.random.uniform(k4, (n_heads, 1, 1), jnp.float32, -s2, s2)
        return (w1t, b1, w2, b2)

    ku, kb = jax.random.split(key)
    return {
        "unary": make_heads(ku, n_unary, d_input),
        "binary": make_heads(kb, n_binary, 2 * d_input),
    }


if __name__ == "__main__":
    B, n_obj, d_input, d_hidden = 2, 8, 16, 32
    n_unary, n_binary = 3, 2

    key = jax.random.PRNGKey(0)
    kx, kp = jax.random.split(key)
    x = jax.random.normal(kx, (B, n_obj, d_input), dtype=jnp.float32)
    params = init_params(kp, d_input, d_hidden, n_unary, n_binary)

    fwd = jax.jit(readout_forward)
    y = jax.block_until_ready(fwd(x, params))
    y_ref = jax.block_until_ready(readout_forward_ref(x, params))

    expected_cols = n_unary * n_obj + n_binary * n_obj * (n_obj - 1)
    assert y.shape == (B, expected_cols), y.shape
    np.testing.assert_allclose(np.asarray(y, dtype=np.float32),
                               np.asarray(y_ref, dtype=np.float32),
                               rtol=1e-3, atol=1e-3)
    print("KERNEL_OK")
</pallas_src>

<mosaic_0001>
module attributes {stable_mosaic.version = 11 : i64} {
  func.func @_readout_kernel(%arg0: i32, %arg1: memref<1x16x16xbf16, #tpu.memory_space<vmem>>, %arg2: memref<96x16xbf16, #tpu.memory_space<vmem>>, %arg3: memref<96x1xf32, #tpu.memory_space<vmem>>, %arg4: memref<96x1xf32, #tpu.memory_space<vmem>>, %arg5: memref<3x1xf32, #tpu.memory_space<vmem>>, %arg6: memref<64x16xbf16, #tpu.memory_space<vmem>>, %arg7: memref<64x16xbf16, #tpu.memory_space<vmem>>, %arg8: memref<64x1xf32, #tpu.memory_space<vmem>>, %arg9: memref<64x1xf32, #tpu.memory_space<vmem>>, %arg10: memref<2x1xf32, #tpu.memory_space<vmem>>, %arg11: memref<1x3x16xf32, #tpu.memory_space<vmem>>, %arg12: memref<1x7x2x16xf32, #tpu.memory_space<vmem>>) attributes {dimension_semantics = [#tpu.dimension_semantics<parallel>], iteration_bounds = array<i64: 1>, scalar_prefetch = 0 : i64, scratch_operands = 0 : i64, tpu.core_type = #tpu.core_type<tc>, window_params = [{transform_indices = @transform_0, window_bounds = array<i64: 1, 16, 16>}, {pipeline_mode = #tpu.pipeline_mode<synchronous>, transform_indices = @transform_1, window_bounds = array<i64: 96, 16>}, {pipeline_mode = #tpu.pipeline_mode<synchronous>, transform_indices = @transform_2, window_bounds = array<i64: 96, 1>}, {pipeline_mode = #tpu.pipeline_mode<synchronous>, transform_indices = @transform_3, window_bounds = array<i64: 96, 1>}, {pipeline_mode = #tpu.pipeline_mode<synchronous>, transform_indices = @transform_4, window_bounds = array<i64: 3, 1>}, {pipeline_mode = #tpu.pipeline_mode<synchronous>, transform_indices = @transform_5, window_bounds = array<i64: 64, 16>}, {pipeline_mode = #tpu.pipeline_mode<synchronous>, transform_indices = @transform_6, window_bounds = array<i64: 64, 16>}, {pipeline_mode = #tpu.pipeline_mode<synchronous>, transform_indices = @transform_7, window_bounds = array<i64: 64, 1>}, {pipeline_mode = #tpu.pipeline_mode<synchronous>, transform_indices = @transform_8, window_bounds = array<i64: 64, 1>}, {pipeline_mode = #tpu.pipeline_mode<synchronous>, transform_indices = @transform_9, window_bounds = array<i64: 2, 1>}, {transform_indices = @transform_10, window_bounds = array<i64: 1, 3, 16>}, {transform_indices = @transform_11, window_bounds = array<i64: 1, 7, 2, 16>}]} {
    %c0 = arith.constant 0 : index
    %c0_0 = arith.constant 0 : index
    %c0_1 = arith.constant 0 : index
    %0 = vector.load %arg1[%c0, %c0_0, %c0_1] : memref<1x16x16xbf16, #tpu.memory_space<vmem>>, vector<1x16x16xbf16>
    %1 = vector.shape_cast %0 : vector<1x16x16xbf16> to vector<16x16xbf16>
    %c0_2 = arith.constant 0 : index
    %c0_3 = arith.constant 0 : index
    %2 = vector.load %arg2[%c0_2, %c0_3] : memref<96x16xbf16, #tpu.memory_space<vmem>>, vector<96x16xbf16>
    %cst = arith.constant dense<0.000000e+00> : vector<96x16xf32>
    %3 = tpu.matmul %2, %1, %cst {dimension_numbers = #tpu.dot_dimension_numbers<[1], [0], [0], [1], [0, 0, 1, 1], [], []>} : vector<96x16xbf16>, vector<16x16xbf16>, vector<96x16xf32> -> vector<96x16xf32>
    %c0_4 = arith.constant 0 : index
    %c0_5 = arith.constant 0 : index
    %4 = vector.load %arg3[%c0_4, %c0_5] : memref<96x1xf32, #tpu.memory_space<vmem>>, vector<96x1xf32>
    %5 = vector.broadcast %4 : vector<96x1xf32> to vector<96x16xf32>
    %6 = arith.addf %3, %5 : vector<96x16xf32>
    %cst_6 = arith.constant 0.000000e+00 : f32
    %7 = vector.broadcast %cst_6 : f32 to vector<96x16xf32>
    %8 = arith.maximumf %6, %7 : vector<96x16xf32>
    %c0_7 = arith.constant 0 : index
    %c0_8 = arith.constant 0 : index
    %9 = vector.load %arg4[%c0_7, %c0_8] : memref<96x1xf32, #tpu.memory_space<vmem>>, vector<96x1xf32>
    %10 = vector.broadcast %9 : vector<96x1xf32> to vector<96x16xf32>
    %11 = arith.mulf %8, %10 : vector<96x16xf32>
    %12 = vector.shape_cast %11 : vector<96x16xf32> to vector<3x32x16xf32>
    %cst_9 = arith.constant dense<0.000000e+00> : vector<3x16xf32>
    %13 = vector.multi_reduction <add>, %12, %cst_9 [1] : vector<3x32x16xf32> to vector<3x16xf32>
    %c0_10 = arith.constant 0 : index
    %c0_11 = arith.constant 0 : index
    %14 = vector.load %arg5[%c0_10, %c0_11] : memref<3x1xf32, #tpu.memory_space<vmem>>, vector<3x1xf32>
    %15 = vector.broadcast %14 : vector<3x1xf32> to vector<3x16xf32>
    %16 = arith.addf %13, %15 : vector<3x16xf32>
    %c0_12 = arith.constant 0 : index
    %c0_13 = arith.constant 0 : index
    %c0_14 = arith.constant 0 : index
    %17 = vector.load %arg11[%c0_12, %c0_13, %c0_14] : memref<1x3x16xf32, #tpu.memory_space<vmem>>, vector<1x3x16xf32>
    %18 = vector.shape_cast %17 : vector<1x3x16xf32> to vector<3x16xf32>
    %19 = vector.shape_cast %16 : vector<3x16xf32> to vector<1x3x16xf32>
    tpu.vector_store %arg11[%c0_12, %c0_13, %c0_14], %19 {strides = array<i32>} : memref<1x3x16xf32, #tpu.memory_space<vmem>>, vector<1x3x16xf32>,
    %c0_15 = arith.constant 0 : index
    %c0_16 = arith.constant 0 : index
    %20 = vector.load %arg6[%c0_15, %c0_16] : memref<64x16xbf16, #tpu.memory_space<vmem>>, vector<64x16xbf16>
    %cst_17 = arith.constant dense<0.000000e+00> : vector<64x16xf32>
    %21 = tpu.matmul %20, %1, %cst_17 {dimension_numbers = #tpu.dot_dimension_numbers<[1], [0], [0], [1], [0, 0, 1, 1], [], []>} : vector<64x16xbf16>, vector<16x16xbf16>, vector<64x16xf32> -> vector<64x16xf32>
    %c0_18 = arith.constant 0 : index
    %c0_19 = arith.constant 0 : index
    %22 = vector.load %arg7[%c0_18, %c0_19] : memref<64x16xbf16, #tpu.memory_space<vmem>>, vector<64x16xbf16>
    %cst_20 = arith.constant dense<0.000000e+00> : vector<64x16xf32>
    %23 = tpu.matmul %22, %1, %cst_20 {dimension_numbers = #tpu.dot_dimension_numbers<[1], [0], [0], [1], [0, 0, 1, 1], [], []>} : vector<64x16xbf16>, vector<16x16xbf16>, vector<64x16xf32> -> vector<64x16xf32>
    %c0_21 = arith.constant 0 : index
    %c0_22 = arith.constant 0 : index
    %24 = vector.load %arg8[%c0_21, %c0_22] : memref<64x1xf32, #tpu.memory_space<vmem>>, vector<64x1xf32>
    %c0_23 = arith.constant 0 : index
    %c0_24 = arith.constant 0 : index
    %25 = vector.load %arg9[%c0_23, %c0_24] : memref<64x1xf32, #tpu.memory_space<vmem>>, vector<64x1xf32>
    %c0_25 = arith.constant 0 : index
    %c0_26 = arith.constant 0 : index
    %26 = vector.load %arg10[%c0_25, %c0_26] : memref<2x1xf32, #tpu.memory_space<vmem>>, vector<2x1xf32>
    %27 = vector.extract_strided_slice %23 {offsets = [0, 2], sizes = [64, 14], strides = [1, 1]} : vector<64x16xf32> to vector<64x14xf32>
    %28 = vector.extract_strided_slice %23 {offsets = [0, 0], sizes = [64, 2], strides = [1, 1]} : vector<64x16xf32> to vector<64x2xf32>
    %29 = tpu.concatenate %27, %28 in 1 : vector<64x14xf32>, vector<64x2xf32> -> vector<64x16xf32>
    %30 = arith.addf %21, %29 : vector<64x16xf32>
    %31 = vector.broadcast %24 : vector<64x1xf32> to vector<64x16xf32>
    %32 = arith.addf %30, %31 : vector<64x16xf32>
    %cst_27 = arith.constant 0.000000e+00 : f32
    %33 = vector.broadcast %cst_27 : f32 to vector<64x16xf32>
    %34 = arith.maximumf %32, %33 : vector<64x16xf32>
    %35 = vector.broadcast %25 : vector<64x1xf32> to vector<64x16xf32>
    %36 = arith.mulf %34, %35 : vector<64x16xf32>
    %37 = vector.shape_cast %36 : vector<64x16xf32> to vector<2x32x16xf32>
    %cst_28 = arith.constant dense<0.000000e+00> : vector<2x16xf32>
    %38 = vector.multi_reduction <add>, %37, %cst_28 [1] : vector<2x32x16xf32> to vector<2x16xf32>
    %39 = vector.broadcast %26 : vector<2x1xf32> to vector<2x16xf32>
    %40 = arith.addf %38, %39 : vector<2x16xf32>
    %c0_29 = arith.constant 0 : index
    %c0_30 = arith.constant 0 : index
    %c0_31 = arith.constant 0 : index
    %c0_32 = arith.constant 0 : index
    %41 = vector.load %arg12[%c0_29, %c0_30, %c0_31, %c0_32] : memref<1x7x2x16xf32, #tpu.memory_space<vmem>>, vector<1x1x2x16xf32>
    %42 = vector.shape_cast %41 : vector<1x1x2x16xf32> to vector<2x16xf32>
    %43 = vector.shape_cast %40 : vector<2x16xf32> to vector<1x1x2x16xf32>
    tpu.vector_store %arg12[%c0_29, %c0_30, %c0_31, %c0_32], %43 {strides = array<i32>} : memref<1x7x2x16xf32, #tpu.memory_space<vmem>>, vector<1x1x2x16xf32>,
    %44 = vector.extract_strided_slice %23 {offsets = [0, 4], sizes = [64, 12], strides = [1, 1]} : vector<64x16xf32> to vector<64x12xf32>
    %45 = vector.extract_strided_slice %23 {offsets = [0, 0], sizes = [64, 4], strides = [1, 1]} : vector<64x16xf32> to vector<64x4xf32>
    %46 = tpu.concatenate %44, %45 in 1 : vector<64x12xf32>, vector<64x4xf32> -> vector<64x16xf32>
    %47 = arith.addf %21, %46 : vector<64x16xf32>
    %48 = vector.broadcast %24 : vector<64x1xf32> to vector<64x16xf32>
    %49 = arith.addf %47, %48 : vector<64x16xf32>
    %cst_33 = arith.constant 0.000000e+00 : f32
    %50 = vector.broadcast %cst_33 : f32 to vector<64x16xf32>
    %51 = arith.maximumf %49, %50 : vector<64x16xf32>
    %52 = vector.broadcast %25 : vector<64x1xf32> to vector<64x16xf32>
    %53 = arith.mulf %51, %52 : vector<64x16xf32>
    %54 = vector.shape_cast %53 : vector<64x16xf32> to vector<2x32x16xf32>
    %cst_34 = arith.constant dense<0.000000e+00> : vector<2x16xf32>
    %55 = vector.multi_reduction <add>, %54, %cst_34 [1] : vector<2x32x16xf32> to vector<2x16xf32>
    %56 = vector.broadcast %26 : vector<2x1xf32> to vector<2x16xf32>
    %57 = arith.addf %55, %56 : vector<2x16xf32>
    %c0_35 = arith.constant 0 : index
    %c1 = arith.constant 1 : index
    %c0_36 = arith.constant 0 : index
    %c0_37 = arith.constant 0 : index
    %58 = vector.load %arg12[%c0_35, %c1, %c0_36, %c0_37] : memref<1x7x2x16xf32, #tpu.memory_space<vmem>>, vector<1x1x2x16xf32>
    %59 = vector.shape_cast %58 : vector<1x1x2x16xf32> to vector<2x16xf32>
    %60 = vector.shape_cast %57 : vector<2x16xf32> to vector<1x1x2x16xf32>
    tpu.vector_store %arg12[%c0_35, %c1, %c0_36, %c0_37], %60 {strides = array<i32>} : memref<1x7x2x16xf32, #tpu.memory_space<vmem>>, vector<1x1x2x16xf32>,
    %61 = vector.extract_strided_slice %23 {offsets = [0, 6], sizes = [64, 10], strides = [1, 1]} : vector<64x16xf32> to vector<64x10xf32>
    %62 = vector.extract_strided_slice %23 {offsets = [0, 0], sizes = [64, 6], strides = [1, 1]} : vector<64x16xf32> to vector<64x6xf32>
    %63 = tpu.concatenate %61, %62 in 1 : vector<64x10xf32>, vector<64x6xf32> -> vector<64x16xf32>
    %64 = arith.addf %21, %63 : vector<64x16xf32>
    %65 = vector.broadcast %24 : vector<64x1xf32> to vector<64x16xf32>
    %66 = arith.addf %64, %65 : vector<64x16xf32>
    %cst_38 = arith.constant 0.000000e+00 : f32
    %67 = vector.broadcast %cst_38 : f32 to vector<64x16xf32>
    %68 = arith.maximumf %66, %67 : vector<64x16xf32>
    %69 = vector.broadcast %25 : vector<64x1xf32> to vector<64x16xf32>
    %70 = arith.mulf %68, %69 : vector<64x16xf32>
    %71 = vector.shape_cast %70 : vector<64x16xf32> to vector<2x32x16xf32>
    %cst_39 = arith.constant dense<0.000000e+00> : vector<2x16xf32>
    %72 = vector.multi_reduction <add>, %71, %cst_39 [1] : vector<2x32x16xf32> to vector<2x16xf32>
    %73 = vector.broadcast %26 : vector<2x1xf32> to vector<2x16xf32>
    %74 = arith.addf %72, %73 : vector<2x16xf32>
    %c0_40 = arith.constant 0 : index
    %c2 = arith.constant 2 : index
    %c0_41 = arith.constant 0 : index
    %c0_42 = arith.constant 0 : index
    %75 = vector.load %arg12[%c0_40, %c2, %c0_41, %c0_42] : memref<1x7x2x16xf32, #tpu.memory_space<vmem>>, vector<1x1x2x16xf32>
    %76 = vector.shape_cast %75 : vector<1x1x2x16xf32> to vector<2x16xf32>
    %77 = vector.shape_cast %74 : vector<2x16xf32> to vector<1x1x2x16xf32>
    tpu.vector_store %arg12[%c0_40, %c2, %c0_41, %c0_42], %77 {strides = array<i32>} : memref<1x7x2x16xf32, #tpu.memory_space<vmem>>, vector<1x1x2x16xf32>,
    %78 = vector.extract_strided_slice %23 {offsets = [0, 8], sizes = [64, 8], strides = [1, 1]} : vector<64x16xf32> to vector<64x8xf32>
    %79 = vector.extract_strided_slice %23 {offsets = [0, 0], sizes = [64, 8], strides = [1, 1]} : vector<64x16xf32> to vector<64x8xf32>
    %80 = tpu.concatenate %78, %79 in 1 : vector<64x8xf32>, vector<64x8xf32> -> vector<64x16xf32>
    %81 = arith.addf %21, %80 : vector<64x16xf32>
    %82 = vector.broadcast %24 : vector<64x1xf32> to vector<64x16xf32>
    %83 = arith.addf %81, %82 : vector<64x16xf32>
    %cst_43 = arith.constant 0.000000e+00 : f32
    %84 = vector.broadcast %cst_43 : f32 to vector<64x16xf32>
    %85 = arith.maximumf %83, %84 : vector<64x16xf32>
    %86 = vector.broadcast %25 : vector<64x1xf32> to vector<64x16xf32>
    %87 = arith.mulf %85, %86 : vector<64x16xf32>
    %88 = vector.shape_cast %87 : vector<64x16xf32> to vector<2x32x16xf32>
    %cst_44 = arith.constant dense<0.000000e+00> : vector<2x16xf32>
    %89 = vector.multi_reduction <add>, %88, %cst_44 [1] : vector<2x32x16xf32> to vector<2x16xf32>
    %90 = vector.broadcast %26 : vector<2x1xf32> to vector<2x16xf32>
    %91 = arith.addf %89, %90 : vector<2x16xf32>
    %c0_45 = arith.constant 0 : index
    %c3 = arith.constant 3 : index
    %c0_46 = arith.constant 0 : index
    %c0_47 = arith.constant 0 : index
    %92 = vector.load %arg12[%c0_45, %c3, %c0_46, %c0_47] : memref<1x7x2x16xf32, #tpu.memory_space<vmem>>, vector<1x1x2x16xf32>
    %93 = vector.shape_cast %92 : vector<1x1x2x16xf32> to vector<2x16xf32>
    %94 = vector.shape_cast %91 : vector<2x16xf32> to vector<1x1x2x16xf32>
    tpu.vector_store %arg12[%c0_45, %c3, %c0_46, %c0_47], %94 {strides = array<i32>} : memref<1x7x2x16xf32, #tpu.memory_space<vmem>>, vector<1x1x2x16xf32>,
    %95 = vector.extract_strided_slice %23 {offsets = [0, 10], sizes = [64, 6], strides = [1, 1]} : vector<64x16xf32> to vector<64x6xf32>
    %96 = vector.extract_strided_slice %23 {offsets = [0, 0], sizes = [64, 10], strides = [1, 1]} : vector<64x16xf32> to vector<64x10xf32>
    %97 = tpu.concatenate %95, %96 in 1 : vector<64x6xf32>, vector<64x10xf32> -> vector<64x16xf32>
    %98 = arith.addf %21, %97 : vector<64x16xf32>
    %99 = vector.broadcast %24 : vector<64x1xf32> to vector<64x16xf32>
    %100 = arith.addf %98, %99 : vector<64x16xf32>
    %cst_48 = arith.constant 0.000000e+00 : f32
    %101 = vector.broadcast %cst_48 : f32 to vector<64x16xf32>
    %102 = arith.maximumf %100, %101 : vector<64x16xf32>
    %103 = vector.broadcast %25 : vector<64x1xf32> to vector<64x16xf32>
    %104 = arith.mulf %102, %103 : vector<64x16xf32>
    %105 = vector.shape_cast %104 : vector<64x16xf32> to vector<2x32x16xf32>
    %cst_49 = arith.constant dense<0.000000e+00> : vector<2x16xf32>
    %106 = vector.multi_reduction <add>, %105, %cst_49 [1] : vector<2x32x16xf32> to vector<2x16xf32>
    %107 = vector.broadcast %26 : vector<2x1xf32> to vector<2x16xf32>
    %108 = arith.addf %106, %107 : vector<2x16xf32>
    %c0_50 = arith.constant 0 : index
    %c4 = arith.constant 4 : index
    %c0_51 = arith.constant 0 : index
    %c0_52 = arith.constant 0 : index
    %109 = vector.load %arg12[%c0_50, %c4, %c0_51, %c0_52] : memref<1x7x2x16xf32, #tpu.memory_space<vmem>>, vector<1x1x2x16xf32>
    %110 = vector.shape_cast %109 : vector<1x1x2x16xf32> to vector<2x16xf32>
    %111 = vector.shape_cast %108 : vector<2x16xf32> to vector<1x1x2x16xf32>
    tpu.vector_store %arg12[%c0_50, %c4, %c0_51, %c0_52], %111 {strides = array<i32>} : memref<1x7x2x16xf32, #tpu.memory_space<vmem>>, vector<1x1x2x16xf32>,
    %112 = vector.extract_strided_slice %23 {offsets = [0, 12], sizes = [64, 4], strides = [1, 1]} : vector<64x16xf32> to vector<64x4xf32>
    %113 = vector.extract_strided_slice %23 {offsets = [0, 0], sizes = [64, 12], strides = [1, 1]} : vector<64x16xf32> to vector<64x12xf32>
    %114 = tpu.concatenate %112, %113 in 1 : vector<64x4xf32>, vector<64x12xf32> -> vector<64x16xf32>
    %115 = arith.addf %21, %114 : vector<64x16xf32>
    %116 = vector.broadcast %24 : vector<64x1xf32> to vector<64x16xf32>
    %117 = arith.addf %115, %116 : vector<64x16xf32>
    %cst_53 = arith.constant 0.000000e+00 : f32
    %118 = vector.broadcast %cst_53 : f32 to vector<64x16xf32>
    %119 = arith.maximumf %117, %118 : vector<64x16xf32>
    %120 = vector.broadcast %25 : vector<64x1xf32> to vector<64x16xf32>
    %121 = arith.mulf %119, %120 : vector<64x16xf32>
    %122 = vector.shape_cast %121 : vector<64x16xf32> to vector<2x32x16xf32>
    %cst_54 = arith.constant dense<0.000000e+00> : vector<2x16xf32>
    %123 = vector.multi_reduction <add>, %122, %cst_54 [1] : vector<2x32x16xf32> to vector<2x16xf32>
    %124 = vector.broadcast %26 : vector<2x1xf32> to vector<2x16xf32>
    %125 = arith.addf %123, %124 : vector<2x16xf32>
    %c0_55 = arith.constant 0 : index
    %c5 = arith.constant 5 : index
    %c0_56 = arith.constant 0 : index
    %c0_57 = arith.constant 0 : index
    %126 = vector.load %arg12[%c0_55, %c5, %c0_56, %c0_57] : memref<1x7x2x16xf32, #tpu.memory_space<vmem>>, vector<1x1x2x16xf32>
    %127 = vector.shape_cast %126 : vector<1x1x2x16xf32> to vector<2x16xf32>
    %128 = vector.shape_cast %125 : vector<2x16xf32> to vector<1x1x2x16xf32>
    tpu.vector_store %arg12[%c0_55, %c5, %c0_56, %c0_57], %128 {strides = array<i32>} : memref<1x7x2x16xf32, #tpu.memory_space<vmem>>, vector<1x1x2x16xf32>,
    %129 = vector.extract_strided_slice %23 {offsets = [0, 14], sizes = [64, 2], strides = [1, 1]} : vector<64x16xf32> to vector<64x2xf32>
    %130 = vector.extract_strided_slice %23 {offsets = [0, 0], sizes = [64, 14], strides = [1, 1]} : vector<64x16xf32> to vector<64x14xf32>
    %131 = tpu.concatenate %129, %130 in 1 : vector<64x2xf32>, vector<64x14xf32> -> vector<64x16xf32>
    %132 = arith.addf %21, %131 : vector<64x16xf32>
    %133 = vector.broadcast %24 : vector<64x1xf32> to vector<64x16xf32>
    %134 = arith.addf %132, %133 : vector<64x16xf32>
    %cst_58 = arith.constant 0.000000e+00 : f32
    %135 = vector.broadcast %cst_58 : f32 to vector<64x16xf32>
    %136 = arith.maximumf %134, %135 : vector<64x16xf32>
    %137 = vector.broadcast %25 : vector<64x1xf32> to vector<64x16xf32>
    %138 = arith.mulf %136, %137 : vector<64x16xf32>
    %139 = vector.shape_cast %138 : vector<64x16xf32> to vector<2x32x16xf32>
    %cst_59 = arith.constant dense<0.000000e+00> : vector<2x16xf32>
    %140 = vector.multi_reduction <add>, %139, %cst_59 [1] : vector<2x32x16xf32> to vector<2x16xf32>
    %141 = vector.broadcast %26 : vector<2x1xf32> to vector<2x16xf32>
    %142 = arith.addf %140, %141 : vector<2x16xf32>
    %c0_60 = arith.constant 0 : index
    %c6 = arith.constant 6 : index
    %c0_61 = arith.constant 0 : index
    %c0_62 = arith.constant 0 : index
    %143 = vector.load %arg12[%c0_60, %c6, %c0_61, %c0_62] : memref<1x7x2x16xf32, #tpu.memory_space<vmem>>, vector<1x1x2x16xf32>
    %144 = vector.shape_cast %143 : vector<1x1x2x16xf32> to vector<2x16xf32>
    %145 = vector.shape_cast %142 : vector<2x16xf32> to vector<1x1x2x16xf32>
    tpu.vector_store %arg12[%c0_60, %c6, %c0_61, %c0_62], %145 {strides = array<i32>} : memref<1x7x2x16xf32, #tpu.memory_space<vmem>>, vector<1x1x2x16xf32>,
    return
  }
  func.func @transform_0(%arg0: i32) -> (i32, i32, i32) {
    %c0_i32 = arith.constant 0 : i32
    %c0_i32_0 = arith.constant 0 : i32
    %c0_i32_1 = arith.constant 0 : i32
    return %arg0, %c0_i32, %c0_i32_0 : i32, i32, i32
  }
  func.func @transform_1(%arg0: i32) -> (i32, i32) {
    %c0_i32 = arith.constant 0 : i32
    %c0_i32_0 = arith.constant 0 : i32
    %c0_i32_1 = arith.constant 0 : i32
    return %c0_i32, %c0_i32_0 : i32, i32
  }
  func.func @transform_2(%arg0: i32) -> (i32, i32) {
    %c0_i32 = arith.constant 0 : i32
    %c0_i32_0 = arith.constant 0 : i32
    %c0_i32_1 = arith.constant 0 : i32
    return %c0_i32, %c0_i32_0 : i32, i32
  }
  func.func @transform_3(%arg0: i32) -> (i32, i32) {
    %c0_i32 = arith.constant 0 : i32
    %c0_i32_0 = arith.constant 0 : i32
    %c0_i32_1 = arith.constant 0 : i32
    return %c0_i32, %c0_i32_0 : i32, i32
  }
  func.func @transform_4(%arg0: i32) -> (i32, i32) {
    %c0_i32 = arith.constant 0 : i32
    %c0_i32_0 = arith.constant 0 : i32
    %c0_i32_1 = arith.constant 0 : i32
    return %c0_i32, %c0_i32_0 : i32, i32
  }
  func.func @transform_5(%arg0: i32) -> (i32, i32) {
    %c0_i32 = arith.constant 0 : i32
    %c0_i32_0 = arith.constant 0 : i32
    %c0_i32_1 = arith.constant 0 : i32
    return %c0_i32, %c0_i32_0 : i32, i32
  }
  func.func @transform_6(%arg0: i32) -> (i32, i32) {
    %c0_i32 = arith.constant 0 : i32
    %c0_i32_0 = arith.constant 0 : i32
    %c0_i32_1 = arith.constant 0 : i32
    return %c0_i32, %c0_i32_0 : i32, i32
  }
  func.func @transform_7(%arg0: i32) -> (i32, i32) {
    %c0_i32 = arith.constant 0 : i32
    %c0_i32_0 = arith.constant 0 : i32
    %c0_i32_1 = arith.constant 0 : i32
    return %c0_i32, %c0_i32_0 : i32, i32
  }
  func.func @transform_8(%arg0: i32) -> (i32, i32) {
    %c0_i32 = arith.constant 0 : i32
    %c0_i32_0 = arith.constant 0 : i32
    %c0_i32_1 = arith.constant 0 : i32
    return %c0_i32, %c0_i32_0 : i32, i32
  }
  func.func @transform_9(%arg0: i32) -> (i32, i32) {
    %c0_i32 = arith.constant 0 : i32
    %c0_i32_0 = arith.constant 0 : i32
    %c0_i32_1 = arith.constant 0 : i32
    return %c0_i32, %c0_i32_0 : i32, i32
  }
  func.func @transform_10(%arg0: i32) -> (i32, i32, i32) {
    %c0_i32 = arith.constant 0 : i32
    %c0_i32_0 = arith.constant 0 : i32
    %c0_i32_1 = arith.constant 0 : i32
    return %arg0, %c0_i32, %c0_i32_0 : i32, i32, i32
  }
  func.func @transform_11(%arg0: i32) -> (i32, i32, i32, i32) {
    %c0_i32 = arith.constant 0 : i32
    %c0_i32_0 = arith.constant 0 : i32
    %c0_i32_1 = arith.constant 0 : i32
    %c0_i32_2 = arith.constant 0 : i32
    return %arg0, %c0_i32, %c0_i32_0, %c0_i32_1 : i32, i32, i32, i32
  }
}

</mosaic_0001>

<llo_original>
// kernel: readout_forward.1
$region0: #{readout_forward.1}
  #allocation0 [shape = 'u32[]', space=smem, size = 0x4, offset = 0x4, fixed_abs, tag = 'smem constant byte address 0x4 - core index']
  #allocation1 [shape = 'u32[144,128]{1,0:T(1,128)}', space=vmem, size = 0x12000, scoped, tag = 'internal scratch']
  %s0 = inlined_call_operand.vmem [shape: bf16[1,16,16], index: 0, kind: input, shape index: {}]
  %s1 = inlined_call_operand.vmem [shape: bf16[96,16], index: 1, kind: input, shape index: {}]
  %s2 = inlined_call_operand.vmem [shape: f32[96,1], index: 2, kind: input, shape index: {}]
  %s3 = inlined_call_operand.vmem [shape: f32[96,1], index: 3, kind: input, shape index: {}]
  %s4 = inlined_call_operand.vmem [shape: f32[3,1], index: 4, kind: input, shape index: {}]
  %s5 = inlined_call_operand.vmem [shape: bf16[64,16], index: 5, kind: input, shape index: {}]
  %s6 = inlined_call_operand.vmem [shape: bf16[64,16], index: 6, kind: input, shape index: {}]
  %s7 = inlined_call_operand.vmem [shape: f32[64,1], index: 7, kind: input, shape index: {}]
  %s8 = inlined_call_operand.vmem [shape: f32[64,1], index: 8, kind: input, shape index: {}]
  %s9 = inlined_call_operand.vmem [shape: f32[2,1], index: 9, kind: input, shape index: {}]
  %s10 = inlined_call_operand.vmem [shape: f32[1,3,16], index: 10, kind: output, shape index: {0}]
  %s11 = inlined_call_operand.vmem [shape: f32[1,7,2,16], index: 11, kind: output, shape index: {1}]
  %12 = xla_tuple %s10, %s11
  %s13 = sld [smem:[#allocation0]]
  $region58: #{readout_forward.1} parent=0
    _
  %s15 = ssub.s32 1, %s13
  %s16 = scalar_select 0, %s15, %s13
  // Predicated region
  $region2: #{readout_forward.1} parent=0 // pred_check
    _
  $region3: #{readout_forward.1} parent=0 // pred_check_branch
    %18 = sbr.rel (0) target = $region5
  $region4: #{readout_forward.1} parent=0 // pred_region
    _
  $region5: #{readout_forward.1} parent=0 // pred_fallthru
    _
  // Predicated region
  $region6: #{readout_forward.1} parent=0 // pred_check
    _
  $region7: #{readout_forward.1} parent=0 // pred_check_branch
    %20 = sbr.rel (0) target = $region9
  $region8: #{readout_forward.1} parent=0 // pred_region
    _
  $region9: #{readout_forward.1} parent=0 // pred_fallthru
    _
  // Predicated region
  $region10: #{readout_forward.1} parent=0 // pred_check
    _
  $region11: #{readout_forward.1} parent=0 // pred_check_branch
    %22 = sbr.rel (0) target = $region13
  $region12: #{readout_forward.1} parent=0 // pred_region
    _
  $region13: #{readout_forward.1} parent=0 // pred_fallthru
    _
  // Predicated region
  $region14: #{readout_forward.1} parent=0 // pred_check
    _
  $region15: #{readout_forward.1} parent=0 // pred_check_branch
    %24 = sbr.rel (0) target = $region17
  $region16: #{readout_forward.1} parent=0 // pred_region
    _
  $region17: #{readout_forward.1} parent=0 // pred_fallthru
    _
  // Predicated region
  $region18: #{readout_forward.1} parent=0 // pred_check
    _
  $region19: #{readout_forward.1} parent=0 // pred_check_branch
    %26 = sbr.rel (0) target = $region21
  $region20: #{readout_forward.1} parent=0 // pred_region
    _
  $region21: #{readout_forward.1} parent=0 // pred_fallthru
    _
  // Predicated region
  $region22: #{readout_forward.1} parent=0 // pred_check
    _
  $region23: #{readout_forward.1} parent=0 // pred_check_branch
    %28 = sbr.rel (0) target = $region25
  $region24: #{readout_forward.1} parent=0 // pred_region
    _
  $region25: #{readout_forward.1} parent=0 // pred_fallthru
    _
  // Predicated region
  $region26: #{readout_forward.1} parent=0 // pred_check
    _
  $region27: #{readout_forward.1} parent=0 // pred_check_branch
    %30 = sbr.rel (0) target = $region29
  $region28: #{readout_forward.1} parent=0 // pred_region
    _
  $region29: #{readout_forward.1} parent=0 // pred_fallthru
    _
  // Predicated region
  $region30: #{readout_forward.1} parent=0 // pred_check
    _
  $region31: #{readout_forward.1} parent=0 // pred_check_branch
    %32 = sbr.rel (0) target = $region33
  $region32: #{readout_forward.1} parent=0 // pred_region
    _
  $region33: #{readout_forward.1} parent=0 // pred_fallthru
    _
  // Predicated region
  $region34: #{readout_forward.1} parent=0 // pred_check
    _
  $region35: #{readout_forward.1} parent=0 // pred_check_branch
    %34 = sbr.rel (0) target = $region37
  $region36: #{readout_forward.1} parent=0 // pred_region
    _
  $region37: #{readout_forward.1} parent=0 // pred_fallthru
    _
  // Predicated region
  $region38: #{readout_forward.1} parent=0 // pred_check
    _
  $region39: #{readout_forward.1} parent=0 // pred_check_branch
    %36 = sbr.rel (0) target = $region41
  $region40: #{readout_forward.1} parent=0 // pred_region
    _
  $region41: #{readout_forward.1} parent=0 // pred_fallthru
    _
  %v38 = vld [vmem:[%s0] sm:$0xf]
  %v39 = vld [vmem:[%s0 + $0x4] sm:$0xf]
  %v40 = vld [vmem:[%s1] sm:$0xf]
  %v41 = vld [vmem:[%s1 + $0x4] sm:$0xf]
  %v42 = vld [vmem:[%s1 + $0x8] sm:$0xf]
  %v43 = vld [vmem:[%s1 + $0xc] sm:$0xf]
  %v44 = vld [vmem:[%s1 + $0x10] sm:$0xf]
  %v45 = vld [vmem:[%s1 + $0x14] sm:$0xf]
  %v46 = vld [vmem:[%s1 + $0x18] sm:$0xf]
  %v47 = vld [vmem:[%s1 + $0x1c] sm:$0xf]
  %v48 = vld [vmem:[%s1 + $0x20] sm:$0xf]
  %v49 = vld [vmem:[%s1 + $0x24] sm:$0xf]
  %v50 = vld [vmem:[%s1 + $0x28] sm:$0xf]
  %v51 = vld [vmem:[%s1 + $0x2c] sm:$0xf]
  %v52 = vld [vmem:[%s2] sm:$0xff]
  %v53 = vld [vmem:[%s2 + $0x8] sm:$0xff]
  %v54 = vld [vmem:[%s2 + $0x10] sm:$0xff]
  %v55 = vld [vmem:[%s2 + $0x18] sm:$0xff]
  %v56 = vld [vmem:[%s2 + $0x20] sm:$0xff]
  %v57 = vld [vmem:[%s2 + $0x28] sm:$0xff]
  %v58 = vld [vmem:[%s2 + $0x30] sm:$0xff]
  %v59 = vld [vmem:[%s2 + $0x38] sm:$0xff]
  %v60 = vld [vmem:[%s2 + $0x40] sm:$0xff]
  %v61 = vld [vmem:[%s2 + $0x48] sm:$0xff]
  %v62 = vld [vmem:[%s2 + $0x50] sm:$0xff]
  %v63 = vld [vmem:[%s2 + $0x58] sm:$0xff]
  %65 = vset.pattern.permute.xlu0 0
  %66 = vperm.xlu0 %65, %v52
  %v67 = vpop.permute.xlu0 %66
  %70 = vset.pattern.permute.xlu0 0
  %71 = vperm.xlu0 %70, %v53
  %v72 = vpop.permute.xlu0 %71
  %75 = vset.pattern.permute.xlu0 0
  %76 = vperm.xlu0 %75, %v54
  %v77 = vpop.permute.xlu0 %76
  %80 = vset.pattern.permute.xlu0 0
  %81 = vperm.xlu0 %80, %v55
  %v82 = vpop.permute.xlu0 %81
  %85 = vset.pattern.permute.xlu0 0
  %86 = vperm.xlu0 %85, %v56
  %v87 = vpop.permute.xlu0 %86
  %90 = vset.pattern.permute.xlu0 0
  %91 = vperm.xlu0 %90, %v57
  %v92 = vpop.permute.xlu0 %91
  %95 = vset.pattern.permute.xlu0 0
  %96 = vperm.xlu0 %95, %v58
  %v97 = vpop.permute.xlu0 %96
  %100 = vset.pattern.permute.xlu0 0
  %101 = vperm.xlu0 %100, %v59
  %v102 = vpop.permute.xlu0 %101
  %105 = vset.pattern.permute.xlu0 0
  %106 = vperm.xlu0 %105, %v60
  %v107 = vpop.permute.xlu0 %106
  %110 = vset.pattern.permute.xlu0 0
  %111 = vperm.xlu0 %110, %v61
  %v112 = vpop.permute.xlu0 %111
  %115 = vset.pattern.permute.xlu0 0
  %116 = vperm.xlu0 %115, %v62
  %v117 = vpop.permute.xlu0 %116
  %120 = vset.pattern.permute.xlu0 0
  %121 = vperm.xlu0 %120, %v63
  %v122 = vpop.permute.xlu0 %121
  %v136 = vunpack.c.l.b16 %v40
  %v137 = vunpack.c.l.b16 %v41
  %v138 = vunpack.c.l.b16 %v42
  %v139 = vunpack.c.l.b16 %v43
  %v140 = vunpack.c.l.b16 %v44
  %v141 = vunpack.c.l.b16 %v45
  %v142 = vunpack.c.l.b16 %v46
  %v143 = vunpack.c.l.b16 %v47
  %v144 = vunpack.c.l.b16 %v48
  %v145 = vunpack.c.l.b16 %v49
  %v146 = vunpack.c.l.b16 %v50
  %v147 = vunpack.c.l.b16 %v51
  %v148 = vpack.c.b16 %v137, %v136
  %v149 = vpack.c.b16 %v139, %v138
  %v150 = vpack.c.b16 %v141, %v140
  %v151 = vpack.c.b16 %v143, %v142
  %v152 = vpack.c.b16 %v145, %v144
  %v153 = vpack.c.b16 %v147, %v146
  %v156 = vunpack.c.l.b16 %v38
  %v157 = vunpack.c.l.b16 %v39
  %v158 = vpack.c.b16 %v157, %v156
  %vm160 = vcmask 130048
  %v162 = vsel %vm160, %v148, 0
  %v165 = vsel %vm160, %v149, 0
  %v168 = vsel %vm160, %v150, 0
  %v171 = vsel %vm160, %v151, 0
  %v174 = vsel %vm160, %v152, 0
  %v177 = vsel %vm160, %v153, 0
  %179 = vmatprep.subr.bf16.mxu0 0
  %180 = vmatpush1.bf16.msra.mxu0 %v158
  %181 = vmatprep.subr.bf16.mxu0 0
  %182 = vmatpush1.bf16.msra.mxu0 0
  %183 = vmatprep.subr.bf16.mxu0 0
  %184 = vmatpush1.bf16.msra.mxu0 0
  %185 = vmatprep.subr.bf16.mxu0 0
  %186 = vmatpush1.bf16.msra.mxu0 0
  %187 = vmatprep.subr.bf16.mxu0 0
  %188 = vmatpush1.bf16.msra.mxu0 0
  %189 = vmatprep.subr.bf16.mxu0 0
  %190 = vmatpush1.bf16.msra.mxu0 0
  %191 = vmatprep.subr.bf16.mxu0 0
  %192 = vmatpush1.bf16.msra.mxu0 0
  %193 = vmatprep.subr.bf16.mxu0 0
  %194 = vmatpush1.bf16.msra.mxu0 0
  %195 = vmatprep.subr.bf16.mxu0 0
  %196 = vmatpush1.bf16.msra.mxu0 0
  %197 = vmatprep.subr.bf16.mxu0 0
  %198 = vmatpush1.bf16.msra.mxu0 0
  %199 = vmatprep.subr.bf16.mxu0 0
  %200 = vmatpush1.bf16.msra.mxu0 0
  %201 = vmatprep.subr.bf16.mxu0 0
  %202 = vmatpush1.bf16.msra.mxu0 0
  %203 = vmatprep.subr.bf16.mxu0 0
  %204 = vmatpush1.bf16.msra.mxu0 0
  %205 = vmatprep.subr.bf16.mxu0 0
  %206 = vmatpush1.bf16.msra.mxu0 0
  %207 = vmatprep.subr.bf16.mxu0 0
  %208 = vmatpush1.bf16.msra.mxu0 0
  %209 = vmatprep.subr.bf16.mxu0 0
  %210 = vmatpush1.bf16.msra.mxu0 0
  %211 = vmatprep.mubr.bf16.mxu0 0
  %212 = vmatmul.mubr.bf16.gmra.mrb[0].mxu0 %v162
  %v213 = vpop.f32.mrb[0].mxu0
  %v214 = vadd.f32 %v67, %v213
  %v215 = vpop.f32.mrb[0].mxu0
  %v216 = vpop.f32.mrb[0].mxu0
  %v217 = vadd.f32 %v72, %v216
  %v218 = vpop.f32.mrb[0].mxu0
  %219 = vmatprep.mubr.bf16.mxu0 0
  %220 = vmatmul.mubr.bf16.gmra.mrb[0].mxu0 %v165
  %v221 = vpop.f32.mrb[0].mxu0
  %v222 = vadd.f32 %v77, %v221
  %v223 = vpop.f32.mrb[0].mxu0
  %v224 = vpop.f32.mrb[0].mxu0
  %v225 = vadd.f32 %v82, %v224
  %v226 = vpop.f32.mrb[0].mxu0
  %227 = vmatprep.mubr.bf16.mxu0 0
  %228 = vmatmul.mubr.bf16.gmra.mrb[0].mxu0 %v168
  %v229 = vpop.f32.mrb[0].mxu0
  %v230 = vadd.f32 %v87, %v229
  %v231 = vpop.f32.mrb[0].mxu0
  %v232 = vpop.f32.mrb[0].mxu0
  %v233 = vadd.f32 %v92, %v232
  %v234 = vpop.f32.mrb[0].mxu0
  %235 = vmatprep.mubr.bf16.mxu0 0
  %236 = vmatmul.mubr.bf16.gmra.mrb[0].mxu0 %v171
  %v237 = vpop.f32.mrb[0].mxu0
  %v238 = vadd.f32 %v97, %v237
  %v239 = vpop.f32.mrb[0].mxu0
  %v240 = vpop.f32.mrb[0].mxu0
  %v241 = vadd.f32 %v102, %v240
  %v242 = vpop.f32.mrb[0].mxu0
  %243 = vmatprep.mubr.bf16.mxu0 0
  %244 = vmatmul.mubr.bf16.gmra.mrb[0].mxu0 %v174
  %v245 = vpop.f32.mrb[0].mxu0
  %v246 = vadd.f32 %v107, %v245
  %v247 = vpop.f32.mrb[0].mxu0
  %v248 = vpop.f32.mrb[0].mxu0
  %v249 = vadd.f32 %v112, %v248
  %v250 = vpop.f32.mrb[0].mxu0
  %251 = vmatprep.mubr.bf16.mxu0 0
  %252 = vmatmul.mubr.bf16.gmra.mrb[0].mxu0 %v177
  %v253 = vpop.f32.mrb[0].mxu0
  %v254 = vadd.f32 %v117, %v253
  %v255 = vpop.f32.mrb[0].mxu0
  %v256 = vpop.f32.mrb[0].mxu0
  %v257 = vadd.f32 %v122, %v256
  %v258 = vpop.f32.mrb[0].mxu0
  %259 = vdwg.mxu0
  %v260 = vmax.f32 %v214, 0.0
  %v261 = vmax.f32 %v217, 0.0
  %v262 = vmax.f32 %v222, 0.0
  %v263 = vmax.f32 %v225, 0.0
  %v264 = vmax.f32 %v230, 0.0
  %v265 = vmax.f32 %v233, 0.0
  %v266 = vmax.f32 %v238, 0.0
  %v267 = vmax.f32 %v241, 0.0
  %v268 = vmax.f32 %v246, 0.0
  %v269 = vmax.f32 %v249, 0.0
  %v270 = vmax.f32 %v254, 0.0
  %v271 = vmax.f32 %v257, 0.0
  %v272 = vld [vmem:[%s3] sm:$0xff]
  %v273 = vld [vmem:[%s3 + $0x8] sm:$0xff]
  %v274 = vld [vmem:[%s3 + $0x10] sm:$0xff]
  %v275 = vld [vmem:[%s3 + $0x18] sm:$0xff]
  %v276 = vld [vmem:[%s3 + $0x20] sm:$0xff]
  %v277 = vld [vmem:[%s3 + $0x28] sm:$0xff]
  %v278 = vld [vmem:[%s3 + $0x30] sm:$0xff]
  %v279 = vld [vmem:[%s3 + $0x38] sm:$0xff]
  %v280 = vld [vmem:[%s3 + $0x40] sm:$0xff]
  %v281 = vld [vmem:[%s3 + $0x48] sm:$0xff]
  %v282 = vld [vmem:[%s3 + $0x50] sm:$0xff]
  %v283 = vld [vmem:[%s3 + $0x58] sm:$0xff]
  %285 = vset.pattern.permute.xlu0 0
  %286 = vperm.xlu0 %285, %v272
  %v287 = vpop.permute.xlu0 %286
  %290 = vset.pattern.permute.xlu0 0
  %291 = vperm.xlu0 %290, %v273
  %v292 = vpop.permute.xlu0 %291
  %295 = vset.pattern.permute.xlu0 0
  %296 = vperm.xlu0 %295, %v274
  %v297 = vpop.permute.xlu0 %296
  %300 = vset.pattern.permute.xlu0 0
  %301 = vperm.xlu0 %300, %v275
  %v302 = vpop.permute.xlu0 %301
  %305 = vset.pattern.permute.xlu0 0
  %306 = vperm.xlu0 %305, %v276
  %v307 = vpop.permute.xlu0 %306
  %310 = vset.pattern.permute.xlu0 0
  %311 = vperm.xlu0 %310, %v277
  %v312 = vpop.permute.xlu0 %311
  %315 = vset.pattern.permute.xlu0 0
  %316 = vperm.xlu0 %315, %v278
  %v317 = vpop.permute.xlu0 %316
  %320 = vset.pattern.permute.xlu0 0
  %321 = vperm.xlu0 %320, %v279
  %v322 = vpop.permute.xlu0 %321
  %325 = vset.pattern.permute.xlu0 0
  %326 = vperm.xlu0 %325, %v280
  %v327 = vpop.permute.xlu0 %326
  %330 = vset.pattern.permute.xlu0 0
  %331 = vperm.xlu0 %330, %v281
  %v332 = vpop.permute.xlu0 %331
  %335 = vset.pattern.permute.xlu0 0
  %336 = vperm.xlu0 %335, %v282
  %v337 = vpop.permute.xlu0 %336
  %340 = vset.pattern.permute.xlu0 0
  %341 = vperm.xlu0 %340, %v283
  %v342 = vpop.permute.xlu0 %341
  %v344 = vmul.f32 %v260, %v287
  %v345 = vmul.f32 %v261, %v292
  %v346 = vmul.f32 %v262, %v297
  %v347 = vmul.f32 %v263, %v302
  %v348 = vmul.f32 %v264, %v307
  %v349 = vmul.f32 %v265, %v312
  %v350 = vmul.f32 %v266, %v317
  %v351 = vmul.f32 %v267, %v322
  %v352 = vmul.f32 %v268, %v327
  %v353 = vmul.f32 %v269, %v332
  %v354 = vmul.f32 %v270, %v337
  %v355 = vmul.f32 %v271, %v342
  %v356 = vsel %vm160, %v344, 0.0
  %v357 = vsel %vm160, %v345, 0.0
  %v358 = vadd.f32 %v356, %v357
  %v359 = vsel %vm160, %v346, 0.0
  %v360 = vadd.f32 %v358, %v359
  %v361 = vsel %vm160, %v347, 0.0
  %v362 = vadd.f32 %v360, %v361
  %v363 = vrot.slane %v362, 4
  %v364 = vadd.f32 %v362, %v363
  %v365 = vrot.slane %v364, 2
  %v366 = vadd.f32 %v364, %v365
  %v367 = vrot.slane %v366, 1
  %v368 = vadd.f32 %v366, %v367
  %v369 = vsel %vm160, %v348, 0.0
  %v370 = vsel %vm160, %v349, 0.0
  %v371 = vadd.f32 %v369, %v370
  %v372 = vsel %vm160, %v350, 0.0
  %v373 = vadd.f32 %v371, %v372
  %v374 = vsel %vm160, %v351, 0.0
  %v375 = vadd.f32 %v373, %v374
  %v376 = vrot.slane %v375, 4
  %v377 = vadd.f32 %v375, %v376
  %v378 = vrot.slane %v377, 2
  %v379 = vadd.f32 %v377, %v378
  %v380 = vrot.slane %v379, 1
  %v381 = vadd.f32 %v379, %v380
  %v382 = vsel %vm160, %v352, 0.0
  %v383 = vsel %vm160, %v353, 0.0
  %v384 = vadd.f32 %v382, %v383
  %v385 = vsel %vm160, %v354, 0.0
  %v386 = vadd.f32 %v384, %v385
  %v387 = vsel %vm160, %v355, 0.0
  %v388 = vadd.f32 %v386, %v387
  %v389 = vrot.slane %v388, 4
  %v390 = vadd.f32 %v388, %v389
  %v391 = vrot.slane %v390, 2
  %v392 = vadd.f32 %v390, %v391
  %v393 = vrot.slane %v392, 1
  %v394 = vadd.f32 %v392, %v393
  %v395 = vld [vmem:[%s4] sm:$0x7]
  %397 = vset.pattern.permute.xlu0 0
  %398 = vperm.xlu0 %397, %v395
  %v399 = vpop.permute.xlu0 %398
  %v400 = vrot.slane %v399, 1
  %v401 = vrot.slane %v399, 2
  %v405 = vadd.f32 %v368, %v399
  %v406 = vadd.f32 %v381, %v400
  %v407 = vadd.f32 %v394, %v401
  %v411 = vrot.slane %v406, 7
  %vm412 = vcmask 1041409
  %v413 = vsel %vm412, %v411, %v405
  %v414 = vrot.slane %v407, 6
  %vm415 = vcmask 1042434
  %v416 = vsel %vm415, %v414, %v413
  %vm418 = vcmask 124928
  %419 = vst.msk [vmem:[%s10] sm:$0x7] %vm418, %v416
  %v420 = vld [vmem:[%s5] sm:$0xf]
  %v421 = vld [vmem:[%s5 + $0x4] sm:$0xf]
  %v422 = vld [vmem:[%s5 + $0x8] sm:$0xf]
  %v423 = vld [vmem:[%s5 + $0xc] sm:$0xf]
  %v424 = vld [vmem:[%s5 + $0x10] sm:$0xf]
  %v425 = vld [vmem:[%s5 + $0x14] sm:$0xf]
  %v426 = vld [vmem:[%s5 + $0x18] sm:$0xf]
  %v427 = vld [vmem:[%s5 + $0x1c] sm:$0xf]
  %v436 = vunpack.c.l.b16 %v420
  %v437 = vunpack.c.l.b16 %v421
  %v438 = vunpack.c.l.b16 %v422
  %v439 = vunpack.c.l.b16 %v423
  %v440 = vunpack.c.l.b16 %v424
  %v441 = vunpack.c.l.b16 %v425
  %v442 = vunpack.c.l.b16 %v426
  %v443 = vunpack.c.l.b16 %v427
  %v444 = vpack.c.b16 %v437, %v436
  %v445 = vpack.c.b16 %v439, %v438
  %v446 = vpack.c.b16 %v441, %v440
  %v447 = vpack.c.b16 %v443, %v442
  %v449 = vsel %vm160, %v444, 0
  %v452 = vsel %vm160, %v445, 0
  %v455 = vsel %vm160, %v446, 0
  %v458 = vsel %vm160, %v447, 0
  %460 = vmatprep.subr.bf16.mxu0 0
  %461 = vmatpush1.bf16.msra.mxu0 %v158
  %462 = vmatprep.subr.bf16.mxu0 0
  %463 = vmatpush1.bf16.msra.mxu0 0
  %464 = vmatprep.subr.bf16.mxu0 0
  %465 = vmatpush1.bf16.msra.mxu0 0
  %466 = vmatprep.subr.bf16.mxu0 0
  %467 = vmatpush1.bf16.msra.mxu0 0
  %468 = vmatprep.subr.bf16.mxu0 0
  %469 = vmatpush1.bf16.msra.mxu0 0
  %470 = vmatprep.subr.bf16.mxu0 0
  %471 = vmatpush1.bf16.msra.mxu0 0
  %472 = vmatprep.subr.bf16.mxu0 0
  %473 = vmatpush1.bf16.msra.mxu0 0
  %474 = vmatprep.subr.bf16.mxu0 0
  %475 = vmatpush1.bf16.msra.mxu0 0
  %476 = vmatprep.subr.bf16.mxu0 0
  %477 = vmatpush1.bf16.msra.mxu0 0
  %478 = vmatprep.subr.bf16.mxu0 0
  %479 = vmatpush1.bf16.msra.mxu0 0
  %480 = vmatprep.subr.bf16.mxu0 0
  %481 = vmatpush1.bf16.msra.mxu0 0
  %482 = vmatprep.subr.bf16.mxu0 0
  %483 = vmatpush1.bf16.msra.mxu0 0
  %484 = vmatprep.subr.bf16.mxu0 0
  %485 = vmatpush1.bf16.msra.mxu0 0
  %486 = vmatprep.subr.bf16.mxu0 0
  %487 = vmatpush1.bf16.msra.mxu0 0
  %488 = vmatprep.subr.bf16.mxu0 0
  %489 = vmatpush1.bf16.msra.mxu0 0
  %490 = vmatprep.subr.bf16.mxu0 0
  %491 = vmatpush1.bf16.msra.mxu0 0
  %492 = vmatprep.mubr.bf16.mxu0 0
  %493 = vmatmul.mubr.bf16.gmra.mrb[0].mxu0 %v449
  %v494 = vpop.f32.mrb[0].mxu0
  %v495 = vadd.f32 0.0, %v494
  %v496 = vpop.f32.mrb[0].mxu0
  %v497 = vpop.f32.mrb[0].mxu0
  %v498 = vadd.f32 0.0, %v497
  %v499 = vpop.f32.mrb[0].mxu0
  %500 = vmatprep.mubr.bf16.mxu0 0
  %501 = vmatmul.mubr.bf16.gmra.mrb[0].mxu0 %v452
  %v502 = vpop.f32.mrb[0].mxu0
  %v503 = vadd.f32 0.0, %v502
  %v504 = vpop.f32.mrb[0].mxu0
  %v505 = vpop.f32.mrb[0].mxu0
  %v506 = vadd.f32 0.0, %v505
  %v507 = vpop.f32.mrb[0].mxu0
  %508 = vmatprep.mubr.bf16.mxu0 0
  %509 = vmatmul.mubr.bf16.gmra.mrb[0].mxu0 %v455
  %v510 = vpop.f32.mrb[0].mxu0
  %v511 = vadd.f32 0.0, %v510
  %v512 = vpop.f32.mrb[0].mxu0
  %v513 = vpop.f32.mrb[0].mxu0
  %v514 = vadd.f32 0.0, %v513
  %v515 = vpop.f32.mrb[0].mxu0
  %516 = vmatprep.mubr.bf16.mxu0 0
  %517 = vmatmul.mubr.bf16.gmra.mrb[0].mxu0 %v458
  %v518 = vpop.f32.mrb[0].mxu0
  %v519 = vadd.f32 0.0, %v518
  %v520 = vpop.f32.mrb[0].mxu0
  %v521 = vpop.f32.mrb[0].mxu0
  %v522 = vadd.f32 0.0, %v521
  %v523 = vpop.f32.mrb[0].mxu0
  %524 = vdwg.mxu0
  %v525 = vld [vmem:[%s6] sm:$0xf]
  %v526 = vld [vmem:[%s6 + $0x4] sm:$0xf]
  %v527 = vld [vmem:[%s6 + $0x8] sm:$0xf]
  %v528 = vld [vmem:[%s6 + $0xc] sm:$0xf]
  %v529 = vld [vmem:[%s6 + $0x10] sm:$0xf]
  %v530 = vld [vmem:[%s6 + $0x14] sm:$0xf]
  %v531 = vld [vmem:[%s6 + $0x18] sm:$0xf]
  %v532 = vld [vmem:[%s6 + $0x1c] sm:$0xf]
  %v541 = vunpack.c.l.b16 %v525
  %v542 = vunpack.c.l.b16 %v526
  %v543 = vunpack.c.l.b16 %v527
  %v544 = vunpack.c.l.b16 %v528
  %v545 = vunpack.c.l.b16 %v529
  %v546 = vunpack.c.l.b16 %v530
  %v547 = vunpack.c.l.b16 %v531
  %v548 = vunpack.c.l.b16 %v532
  %v549 = vpack.c.b16 %v542, %v541
  %v550 = vpack.c.b16 %v544, %v543
  %v551 = vpack.c.b16 %v546, %v545
  %v552 = vpack.c.b16 %v548, %v547
  %v554 = vsel %vm160, %v549, 0
  %v557 = vsel %vm160, %v550, 0
  %v560 = vsel %vm160, %v551, 0
  %v563 = vsel %vm160, %v552, 0
  %565 = vmatprep.subr.bf16.mxu0 0
  %566 = vmatpush1.bf16.msra.mxu0 %v158
  %567 = vmatprep.subr.bf16.mxu0 0
  %568 = vmatpush1.bf16.msra.mxu0 0
  %569 = vmatprep.subr.bf16.mxu0 0
  %570 = vmatpush1.bf16.msra.mxu0 0
  %571 = vmatprep.subr.bf16.mxu0 0
  %572 = vmatpush1.bf16.msra.mxu0 0
  %573 = vmatprep.subr.bf16.mxu0 0
  %574 = vmatpush1.bf16.msra.mxu0 0
  %575 = vmatprep.subr.bf16.mxu0 0
  %576 = vmatpush1.bf16.msra.mxu0 0
  %577 = vmatprep.subr.bf16.mxu0 0
  %578 = vmatpush1.bf16.msra.mxu0 0
  %579 = vmatprep.subr.bf16.mxu0 0
  %580 = vmatpush1.bf16.msra.mxu0 0
  %581 = vmatprep.subr.bf16.mxu0 0
  %582 = vmatpush1.bf16.msra.mxu0 0
  %583 = vmatprep.subr.bf16.mxu0 0
  %584 = vmatpush1.bf16.msra.mxu0 0
  %585 = vmatprep.subr.bf16.mxu0 0
  %586 = vmatpush1.bf16.msra.mxu0 0
  %587 = vmatprep.subr.bf16.mxu0 0
  %588 = vmatpush1.bf16.msra.mxu0 0
  %589 = vmatprep.subr.bf16.mxu0 0
  %590 = vmatpush1.bf16.msra.mxu0 0
  %591 = vmatprep.subr.bf16.mxu0 0
  %592 = vmatpush1.bf16.msra.mxu0 0
  %593 = vmatprep.subr.bf16.mxu0 0
  %594 = vmatpush1.bf16.msra.mxu0 0
  %595 = vmatprep.subr.bf16.mxu0 0
  %596 = vmatpush1.bf16.msra.mxu0 0
  %597 = vmatprep.mubr.bf16.mxu0 0
  %598 = vmatmul.mubr.bf16.gmra.mrb[0].mxu0 %v554
  %v599 = vpop.f32.mrb[0].mxu0
  %v600 = vadd.f32 0.0, %v599
  %v601 = vpop.f32.mrb[0].mxu0
  %v602 = vpop.f32.mrb[0].mxu0
  %v603 = vadd.f32 0.0, %v602
  %v604 = vpop.f32.mrb[0].mxu0
  %605 = vmatprep.mubr.bf16.mxu0 0
  %606 = vmatmul.mubr.bf16.gmra.mrb[0].mxu0 %v557
  %v607 = vpop.f32.mrb[0].mxu0
  %v608 = vadd.f32 0.0, %v607
  %v609 = vpop.f32.mrb[0].mxu0
  %v610 = vpop.f32.mrb[0].mxu0
  %v611 = vadd.f32 0.0, %v610
  %v612 = vpop.f32.mrb[0].mxu0
  %613 = vmatprep.mubr.bf16.mxu0 0
  %614 = vmatmul.mubr.bf16.gmra.mrb[0].mxu0 %v560
  %v615 = vpop.f32.mrb[0].mxu0
  %v616 = vadd.f32 0.0, %v615
  %v617 = vpop.f32.mrb[0].mxu0
  %v618 = vpop.f32.mrb[0].mxu0
  %v619 = vadd.f32 0.0, %v618
  %v620 = vpop.f32.mrb[0].mxu0
  %621 = vmatprep.mubr.bf16.mxu0 0
  %622 = vmatmul.mubr.bf16.gmra.mrb[0].mxu0 %v563
  %v623 = vpop.f32.mrb[0].mxu0
  %v624 = vadd.f32 0.0, %v623
  %v625 = vpop.f32.mrb[0].mxu0
  %v626 = vpop.f32.mrb[0].mxu0
  %v627 = vadd.f32 0.0, %v626
  %v628 = vpop.f32.mrb[0].mxu0
  %629 = vdwg.mxu0
  %v630 = vld [vmem:[%s7] sm:$0xff]
  %v631 = vld [vmem:[%s7 + $0x8] sm:$0xff]
  %v632 = vld [vmem:[%s7 + $0x10] sm:$0xff]
  %v633 = vld [vmem:[%s7 + $0x18] sm:$0xff]
  %v634 = vld [vmem:[%s7 + $0x20] sm:$0xff]
  %v635 = vld [vmem:[%s7 + $0x28] sm:$0xff]
  %v636 = vld [vmem:[%s7 + $0x30] sm:$0xff]
  %v637 = vld [vmem:[%s7 + $0x38] sm:$0xff]
  %v638 = vld [vmem:[%s8] sm:$0xff]
  %v639 = vld [vmem:[%s8 + $0x8] sm:$0xff]
  %v640 = vld [vmem:[%s8 + $0x10] sm:$0xff]
  %v641 = vld [vmem:[%s8 + $0x18] sm:$0xff]
  %v642 = vld [vmem:[%s8 + $0x20] sm:$0xff]
  %v643 = vld [vmem:[%s8 + $0x28] sm:$0xff]
  %v644 = vld [vmem:[%s8 + $0x30] sm:$0xff]
  %v645 = vld [vmem:[%s8 + $0x38] sm:$0xff]
  %v646 = vld [vmem:[%s9] sm:$0x3]
  %655 = vrot.lane.b32.xlu0 %v600, 126
  %v656 = vpop.permute.xlu0 %655
  %657 = vrot.lane.b32.xlu0 %v603, 126
  %v658 = vpop.permute.xlu0 %657
  %659 = vrot.lane.b32.xlu0 %v608, 126
  %v660 = vpop.permute.xlu0 %659
  %661 = vrot.lane.b32.xlu0 %v611, 126
  %v662 = vpop.permute.xlu0 %661
  %663 = vrot.lane.b32.xlu0 %v616, 126
  %v664 = vpop.permute.xlu0 %663
  %665 = vrot.lane.b32.xlu0 %v619, 126
  %v666 = vpop.permute.xlu0 %665
  %667 = vrot.lane.b32.xlu0 %v624, 126
  %v668 = vpop.permute.xlu0 %667
  %669 = vrot.lane.b32.xlu0 %v627, 126
  %v670 = vpop.permute.xlu0 %669
  %679 = vrot.lane.b32.xlu0 %v600, 14
  %v680 = vpop.permute.xlu0 %679
  %681 = vrot.lane.b32.xlu0 %v603, 14
  %v682 = vpop.permute.xlu0 %681
  %683 = vrot.lane.b32.xlu0 %v608, 14
  %v684 = vpop.permute.xlu0 %683
  %685 = vrot.lane.b32.xlu0 %v611, 14
  %v686 = vpop.permute.xlu0 %685
  %687 = vrot.lane.b32.xlu0 %v616, 14
  %v688 = vpop.permute.xlu0 %687
  %689 = vrot.lane.b32.xlu0 %v619, 14
  %v690 = vpop.permute.xlu0 %689
  %691 = vrot.lane.b32.xlu0 %v624, 14
  %v692 = vpop.permute.xlu0 %691
  %693 = vrot.lane.b32.xlu0 %v627, 14
  %v694 = vpop.permute.xlu0 %693
  %vm703 = vcmask 113664
  %v704 = vsel %vm703, %v656, %v680
  %v705 = vsel %vm703, %v658, %v682
  %v706 = vsel %vm703, %v660, %v684
  %v707 = vsel %vm703, %v662, %v686
  %v708 = vsel %vm703, %v664, %v688
  %v709 = vsel %vm703, %v666, %v690
  %v710 = vsel %vm703, %v668, %v692
  %v711 = vsel %vm703, %v670, %v694
  %v712 = vadd.f32 %v495, %v704
  %v713 = vadd.f32 %v498, %v705
  %v714 = vadd.f32 %v503, %v706
  %v715 = vadd.f32 %v506, %v707
  %v716 = vadd.f32 %v511, %v708
  %v717 = vadd.f32 %v514, %v709
  %v718 = vadd.f32 %v519, %v710
  %v719 = vadd.f32 %v522, %v711
  %721 = vset.pattern.permute.xlu0 0
  %722 = vperm.xlu0 %721, %v630
  %v723 = vpop.permute.xlu0 %722
  %726 = vset.pattern.permute.xlu0 0
  %727 = vperm.xlu0 %726, %v631
  %v728 = vpop.permute.xlu0 %727
  %731 = vset.pattern.permute.xlu0 0
  %732 = vperm.xlu0 %731, %v632
  %v733 = vpop.permute.xlu0 %732
  %736 = vset.pattern.permute.xlu0 0
  %737 = vperm.xlu0 %736, %v633
  %v738 = vpop.permute.xlu0 %737
  %741 = vset.pattern.permute.xlu0 0
  %742 = vperm.xlu0 %741, %v634
  %v743 = vpop.permute.xlu0 %742
  %746 = vset.pattern.permute.xlu0 0
  %747 = vperm.xlu0 %746, %v635
  %v748 = vpop.permute.xlu0 %747
  %751 = vset.pattern.permute.xlu0 0
  %752 = vperm.xlu0 %751, %v636
  %v753 = vpop.permute.xlu0 %752
  %756 = vset.pattern.permute.xlu0 0
  %757 = vperm.xlu0 %756, %v637
  %v758 = vpop.permute.xlu0 %757
  %v760 = vadd.f32 %v712, %v723
  %v761 = vadd.f32 %v713, %v728
  %v762 = vadd.f32 %v714, %v733
  %v763 = vadd.f32 %v715, %v738
  %v764 = vadd.f32 %v716, %v743
  %v765 = vadd.f32 %v717, %v748
  %v766 = vadd.f32 %v718, %v753
  %v767 = vadd.f32 %v719, %v758
  %v768 = vmax.f32 %v760, 0.0
  %v769 = vmax.f32 %v761, 0.0
  %v770 = vmax.f32 %v762, 0.0
  %v771 = vmax.f32 %v763, 0.0
  %v772 = vmax.f32 %v764, 0.0
  %v773 = vmax.f32 %v765, 0.0
  %v774 = vmax.f32 %v766, 0.0
  %v775 = vmax.f32 %v767, 0.0
  %777 = vset.pattern.permute.xlu0 0
  %778 = vperm.xlu0 %777, %v638
  %v779 = vpop.permute.xlu0 %778
  %782 = vset.pattern.permute.xlu0 0
  %783 = vperm.xlu0 %782, %v639
  %v784 = vpop.permute.xlu0 %783
  %787 = vset.pattern.permute.xlu0 0
  %788 = vperm.xlu0 %787, %v640
  %v789 = vpop.permute.xlu0 %788
  %792 = vset.pattern.permute.xlu0 0
  %793 = vperm.xlu0 %792, %v641
  %v794 = vpop.permute.xlu0 %793
  %797 = vset.pattern.permute.xlu0 0
  %798 = vperm.xlu0 %797, %v642
  %v799 = vpop.permute.xlu0 %798
  %802 = vset.pattern.permute.xlu0 0
  %803 = vperm.xlu0 %802, %v643
  %v804 = vpop.permute.xlu0 %803
  %807 = vset.pattern.permute.xlu0 0
  %808 = vperm.xlu0 %807, %v644
  %v809 = vpop.permute.xlu0 %808
  %812 = vset.pattern.permute.xlu0 0
  %813 = vperm.xlu0 %812, %v645
  %v814 = vpop.permute.xlu0 %813
  %v816 = vmul.f32 %v768, %v779
  %v817 = vmul.f32 %v769, %v784
  %v818 = vmul.f32 %v770, %v789
  %v819 = vmul.f32 %v771, %v794
  %v820 = vmul.f32 %v772, %v799
  %v821 = vmul.f32 %v773, %v804
  %v822 = vmul.f32 %v774, %v809
  %v823 = vmul.f32 %v775, %v814
  %v824 = vsel %vm160, %v816, 0.0
  %v825 = vsel %vm160, %v817, 0.0
  %v826 = vadd.f32 %v824, %v825
  %v827 = vsel %vm160, %v818, 0.0
  %v828 = vadd.f32 %v826, %v827
  %v829 = vsel %vm160, %v819, 0.0
  %v830 = vadd.f32 %v828, %v829
  %v831 = vrot.slane %v830, 4
  %v832 = vadd.f32 %v830, %v831
  %v833 = vrot.slane %v832, 2
  %v834 = vadd.f32 %v832, %v833
  %v835 = vrot.slane %v834, 1
  %v836 = vadd.f32 %v834, %v835
  %v837 = vsel %vm160, %v820, 0.0
  %v838 = vsel %vm160, %v821, 0.0
  %v839 = vadd.f32 %v837, %v838
  %v840 = vsel %vm160, %v822, 0.0
  %v841 = vadd.f32 %v839, %v840
  %v842 = vsel %vm160, %v823, 0.0
  %v843 = vadd.f32 %v841, %v842
  %v844 = vrot.slane %v843, 4
  %v845 = vadd.f32 %v843, %v844
  %v846 = vrot.slane %v845, 2
  %v847 = vadd.f32 %v845, %v846
  %v848 = vrot.slane %v847, 1
  %v849 = vadd.f32 %v847, %v848
  %851 = vset.pattern.permute.xlu0 0
  %852 = vperm.xlu0 %851, %v646
  %v853 = vpop.permute.xlu0 %852
  %v854 = vrot.slane %v853, 1
  %v857 = vadd.f32 %v836, %v853
  %v858 = vadd.f32 %v849, %v854
  %v861 = vrot.slane %v858, 7
  %v862 = vsel %vm412, %v861, %v857
  %vm864 = vcmask 123904
  %865 = vst.msk [vmem:[%s11] sm:$0x3] %vm864, %v862
  %866 = vrot.lane.b32.xlu0 %v600, 124
  %v867 = vpop.permute.xlu0 %866
  %868 = vrot.lane.b32.xlu0 %v603, 124
  %v869 = vpop.permute.xlu0 %868
  %870 = vrot.lane.b32.xlu0 %v608, 124
  %v871 = vpop.permute.xlu0 %870
  %872 = vrot.lane.b32.xlu0 %v611, 124
  %v873 = vpop.permute.xlu0 %872
  %874 = vrot.lane.b32.xlu0 %v616, 124
  %v875 = vpop.permute.xlu0 %874
  %876 = vrot.lane.b32.xlu0 %v619, 124
  %v877 = vpop.permute.xlu0 %876
  %878 = vrot.lane.b32.xlu0 %v624, 124
  %v879 = vpop.permute.xlu0 %878
  %880 = vrot.lane.b32.xlu0 %v627, 124
  %v881 = vpop.permute.xlu0 %880
  %890 = vrot.lane.b32.xlu0 %v600, 12
  %v891 = vpop.permute.xlu0 %890
  %892 = vrot.lane.b32.xlu0 %v603, 12
  %v893 = vpop.permute.xlu0 %892
  %894 = vrot.lane.b32.xlu0 %v608, 12
  %v895 = vpop.permute.xlu0 %894
  %896 = vrot.lane.b32.xlu0 %v611, 12
  %v897 = vpop.permute.xlu0 %896
  %898 = vrot.lane.b32.xlu0 %v616, 12
  %v899 = vpop.permute.xlu0 %898
  %900 = vrot.lane.b32.xlu0 %v619, 12
  %v901 = vpop.permute.xlu0 %900
  %902 = vrot.lane.b32.xlu0 %v624, 12
  %v903 = vpop.permute.xlu0 %902
  %904 = vrot.lane.b32.xlu0 %v627, 12
  %v905 = vpop.permute.xlu0 %904
  %vm914 = vcmask 97280
  %v915 = vsel %vm914, %v867, %v891
  %v916 = vsel %vm914, %v869, %v893
  %v917 = vsel %vm914, %v871, %v895
  %v918 = vsel %vm914, %v873, %v897
  %v919 = vsel %vm914, %v875, %v899
  %v920 = vsel %vm914, %v877, %v901
  %v921 = vsel %vm914, %v879, %v903
  %v922 = vsel %vm914, %v881, %v905
  %v923 = vadd.f32 %v495, %v915
  %v924 = vadd.f32 %v498, %v916
  %v925 = vadd.f32 %v503, %v917
  %v926 = vadd.f32 %v506, %v918
  %v927 = vadd.f32 %v511, %v919
  %v928 = vadd.f32 %v514, %v920
  %v929 = vadd.f32 %v519, %v921
  %v930 = vadd.f32 %v522, %v922
  %v931 = vadd.f32 %v923, %v723
  %v932 = vadd.f32 %v924, %v728
  %v933 = vadd.f32 %v925, %v733
  %v934 = vadd.f32 %v926, %v738
  %v935 = vadd.f32 %v927, %v743
  %v936 = vadd.f32 %v928, %v748
  %v937 = vadd.f32 %v929, %v753
  %v938 = vadd.f32 %v930, %v758
  %v939 = vmax.f32 %v931, 0.0
  %v940 = vmax.f32 %v932, 0.0
  %v941 = vmax.f32 %v933, 0.0
  %v942 = vmax.f32 %v934, 0.0
  %v943 = vmax.f32 %v935, 0.0
  %v944 = vmax.f32 %v936, 0.0
  %v945 = vmax.f32 %v937, 0.0
  %v946 = vmax.f32 %v938, 0.0
  %v947 = vmul.f32 %v939, %v779
  %v948 = vmul.f32 %v940, %v784
  %v949 = vmul.f32 %v941, %v789
  %v950 = vmul.f32 %v942, %v794
  %v951 = vmul.f32 %v943, %v799
  %v952 = vmul.f32 %v944, %v804
  %v953 = vmul.f32 %v945, %v809
  %v954 = vmul.f32 %v946, %v814
  %v955 = vsel %vm160, %v947, 0.0
  %v956 = vsel %vm160, %v948, 0.0
  %v957 = vadd.f32 %v955, %v956
  %v958 = vsel %vm160, %v949, 0.0
  %v959 = vadd.f32 %v957, %v958
  %v960 = vsel %vm160, %v950, 0.0
  %v961 = vadd.f32 %v959, %v960
  %v962 = vrot.slane %v961, 4
  %v963 = vadd.f32 %v961, %v962
  %v964 = vrot.slane %v963, 2
  %v965 = vadd.f32 %v963, %v964
  %v966 = vrot.slane %v965, 1
  %v967 = vadd.f32 %v965, %v966
  %v968 = vsel %vm160, %v951, 0.0
  %v969 = vsel %vm160, %v952, 0.0
  %v970 = vadd.f32 %v968, %v969
  %v971 = vsel %vm160, %v953, 0.0
  %v972 = vadd.f32 %v970, %v971
  %v973 = vsel %vm160, %v954, 0.0
  %v974 = vadd.f32 %v972, %v973
  %v975 = vrot.slane %v974, 4
  %v976 = vadd.f32 %v974, %v975
  %v977 = vrot.slane %v976, 2
  %v978 = vadd.f32 %v976, %v977
  %v979 = vrot.slane %v978, 1
  %v980 = vadd.f32 %v978, %v979
  %v981 = vadd.f32 %v967, %v853
  %v982 = vadd.f32 %v980, %v854
  %v985 = vrot.slane %v982, 7
  %v986 = vsel %vm412, %v985, %v981
  %s988 = scalar_lea.vmem %s11, 2
  %989 = vst.msk [vmem:[%s988] sm:$0x3] %vm864, %v986
  %990 = vrot.lane.b32.xlu0 %v600, 122
  %v991 = vpop.permute.xlu0 %990
  %992 = vrot.lane.b32.xlu0 %v603, 122
  %v993 = vpop.permute.xlu0 %992
  %994 = vrot.lane.b32.xlu0 %v608, 122
  %v995 = vpop.permute.xlu0 %994
  %996 = vrot.lane.b32.xlu0 %v611, 122
  %v997 = vpop.permute.xlu0 %996
  %998 = vrot.lane.b32.xlu0 %v616, 122
  %v999 = vpop.permute.xlu0 %998
  %1000 = vrot.lane.b32.xlu0 %v619, 122
  %v1001 = vpop.permute.xlu0 %1000
  %1002 = vrot.lane.b32.xlu0 %v624, 122
  %v1003 = vpop.permute.xlu0 %1002
  %1004 = vrot.lane.b32.xlu0 %v627, 122
  %v1005 = vpop.permute.xlu0 %1004
  %1014 = vrot.lane.b32.xlu0 %v600, 10
  %v1015 = vpop.permute.xlu0 %1014
  %1016 = vrot.lane.b32.xlu0 %v603, 10
  %v1017 = vpop.permute.xlu0 %1016
  %1018 = vrot.lane.b32.xlu0 %v608, 10
  %v1019 = vpop.permute.xlu0 %1018
  %1020 = vrot.lane.b32.xlu0 %v611, 10
  %v1021 = vpop.permute.xlu0 %1020
  %1022 = vrot.lane.b32.xlu0 %v616, 10
  %v1023 = vpop.permute.xlu0 %1022
  %1024 = vrot.lane.b32.xlu0 %v619, 10
  %v1025 = vpop.permute.xlu0 %1024
  %1026 = vrot.lane.b32.xlu0 %v624, 10
  %v1027 = vpop.permute.xlu0 %1026
  %1028 = vrot.lane.b32.xlu0 %v627, 10
  %v1029 = vpop.permute.xlu0 %1028
  %vm1038 = vcmask 80896
  %v1039 = vsel %vm1038, %v991, %v1015
  %v1040 = vsel %vm1038, %v993, %v1017
  %v1041 = vsel %vm1038, %v995, %v1019
  %v1042 = vsel %vm1038, %v997, %v1021
  %v1043 = vsel %vm1038, %v999, %v1023
  %v1044 = vsel %vm1038, %v1001, %v1025
  %v1045 = vsel %vm1038, %v1003, %v1027
  %v1046 = vsel %vm1038, %v1005, %v1029
  %v1047 = vadd.f32 %v495, %v1039
  %v1048 = vadd.f32 %v498, %v1040
  %v1049 = vadd.f32 %v503, %v1041
  %v1050 = vadd.f32 %v506, %v1042
  %v1051 = vadd.f32 %v511, %v1043
  %v1052 = vadd.f32 %v514, %v1044
  %v1053 = vadd.f32 %v519, %v1045
  %v1054 = vadd.f32 %v522, %v1046
  %v1055 = vadd.f32 %v1047, %v723
  %v1056 = vadd.f32 %v1048, %v728
  %v1057 = vadd.f32 %v1049, %v733
  %v1058 = vadd.f32 %v1050, %v738
  %v1059 = vadd.f32 %v1051, %v743
  %v1060 = vadd.f32 %v1052, %v748
  %v1061 = vadd.f32 %v1053, %v753
  %v1062 = vadd.f32 %v1054, %v758
  %v1063 = vmax.f32 %v1055, 0.0
  %v1064 = vmax.f32 %v1056, 0.0
  %v1065 = vmax.f32 %v1057, 0.0
  %v1066 = vmax.f32 %v1058, 0.0
  %v1067 = vmax.f32 %v1059, 0.0
  %v1068 = vmax.f32 %v1060, 0.0
  %v1069 = vmax.f32 %v1061, 0.0
  %v1070 = vmax.f32 %v1062, 0.0
  %v1071 = vmul.f32 %v1063, %v779
  %v1072 = vmul.f32 %v1064, %v784
  %v1073 = vmul.f32 %v1065, %v789
  %v1074 = vmul.f32 %v1066, %v794
  %v1075 = vmul.f32 %v1067, %v799
  %v1076 = vmul.f32 %v1068, %v804
  %v1077 = vmul.f32 %v1069, %v809
  %v1078 = vmul.f32 %v1070, %v814
  %v1079 = vsel %vm160, %v1071, 0.0
  %v1080 = vsel %vm160, %v1072, 0.0
  %v1081 = vadd.f32 %v1079, %v1080
  %v1082 = vsel %vm160, %v1073, 0.0
  %v1083 = vadd.f32 %v1081, %v1082
  %v1084 = vsel %vm160, %v1074, 0.0
  %v1085 = vadd.f32 %v1083, %v1084
  %v1086 = vrot.slane %v1085, 4
  %v1087 = vadd.f32 %v1085, %v1086
  %v1088 = vrot.slane %v1087, 2
  %v1089 = vadd.f32 %v1087, %v1088
  %v1090 = vrot.slane %v1089, 1
  %v1091 = vadd.f32 %v1089, %v1090
  %v1092 = vsel %vm160, %v1075, 0.0
  %v1093 = vsel %vm160, %v1076, 0.0
  %v1094 = vadd.f32 %v1092, %v1093
  %v1095 = vsel %vm160, %v1077, 0.0
  %v1096 = vadd.f32 %v1094, %v1095
  %v1097 = vsel %vm160, %v1078, 0.0
  %v1098 = vadd.f32 %v1096, %v1097
  %v1099 = vrot.slane %v1098, 4
  %v1100 = vadd.f32 %v1098, %v1099
  %v1101 = vrot.slane %v1100, 2
  %v1102 = vadd.f32 %v1100, %v1101
  %v1103 = vrot.slane %v1102, 1
  %v1104 = vadd.f32 %v1102, %v1103
  %v1105 = vadd.f32 %v1091, %v853
  %v1106 = vadd.f32 %v1104, %v854
  %v1109 = vrot.slane %v1106, 7
  %v1110 = vsel %vm412, %v1109, %v1105
  %s1112 = scalar_lea.vmem %s11, 4
  %1113 = vst.msk [vmem:[%s1112] sm:$0x3] %vm864, %v1110
  %1114 = vrot.lane.b32.xlu0 %v600, 120
  %v1115 = vpop.permute.xlu0 %1114
  %1116 = vrot.lane.b32.xlu0 %v603, 120
  %v1117 = vpop.permute.xlu0 %1116
  %1118 = vrot.lane.b32.xlu0 %v608, 120
  %v1119 = vpop.permute.xlu0 %1118
  %1120 = vrot.lane.b32.xlu0 %v611, 120
  %v1121 = vpop.permute.xlu0 %1120
  %1122 = vrot.lane.b32.xlu0 %v616, 120
  %v1123 = vpop.permute.xlu0 %1122
  %1124 = vrot.lane.b32.xlu0 %v619, 120
  %v1125 = vpop.permute.xlu0 %1124
  %1126 = vrot.lane.b32.xlu0 %v624, 120
  %v1127 = vpop.permute.xlu0 %1126
  %1128 = vrot.lane.b32.xlu0 %v627, 120
  %v1129 = vpop.permute.xlu0 %1128
  %1138 = vrot.lane.b32.xlu0 %v600, 8
  %v1139 = vpop.permute.xlu0 %1138
  %1140 = vrot.lane.b32.xlu0 %v603, 8
  %v1141 = vpop.permute.xlu0 %1140
  %1142 = vrot.lane.b32.xlu0 %v608, 8
  %v1143 = vpop.permute.xlu0 %1142
  %1144 = vrot.lane.b32.xlu0 %v611, 8
  %v1145 = vpop.permute.xlu0 %1144
  %1146 = vrot.lane.b32.xlu0 %v616, 8
  %v1147 = vpop.permute.xlu0 %1146
  %1148 = vrot.lane.b32.xlu0 %v619, 8
  %v1149 = vpop.permute.xlu0 %1148
  %1150 = vrot.lane.b32.xlu0 %v624, 8
  %v1151 = vpop.permute.xlu0 %1150
  %1152 = vrot.lane.b32.xlu0 %v627, 8
  %v1153 = vpop.permute.xlu0 %1152
  %vm1162 = vcmask 64512
  %v1163 = vsel %vm1162, %v1115, %v1139
  %v1164 = vsel %vm1162, %v1117, %v1141
  %v1165 = vsel %vm1162, %v1119, %v1143
  %v1166 = vsel %vm1162, %v1121, %v1145
  %v1167 = vsel %vm1162, %v1123, %v1147
  %v1168 = vsel %vm1162, %v1125, %v1149
  %v1169 = vsel %vm1162, %v1127, %v1151
  %v1170 = vsel %vm1162, %v1129, %v1153
  %v1171 = vadd.f32 %v495, %v1163
  %v1172 = vadd.f32 %v498, %v1164
  %v1173 = vadd.f32 %v503, %v1165
  %v1174 = vadd.f32 %v506, %v1166
  %v1175 = vadd.f32 %v511, %v1167
  %v1176 = vadd.f32 %v514, %v1168
  %v1177 = vadd.f32 %v519, %v1169
  %v1178 = vadd.f32 %v522, %v1170
  %v1179 = vadd.f32 %v1171, %v723
  %v1180 = vadd.f32 %v1172, %v728
  %v1181 = vadd.f32 %v1173, %v733
  %v1182 = vadd.f32 %v1174, %v738
  %v1183 = vadd.f32 %v1175, %v743
  %v1184 = vadd.f32 %v1176, %v748
  %v1185 = vadd.f32 %v1177, %v753
  %v1186 = vadd.f32 %v1178, %v758
  %v1187 = vmax.f32 %v1179, 0.0
  %v1188 = vmax.f32 %v1180, 0.0
  %v1189 = vmax.f32 %v1181, 0.0
  %v1190 = vmax.f32 %v1182, 0.0
  %v1191 = vmax.f32 %v1183, 0.0
  %v1192 = vmax.f32 %v1184, 0.0
  %v1193 = vmax.f32 %v1185, 0.0
  %v1194 = vmax.f32 %v1186, 0.0
  %v1195 = vmul.f32 %v1187, %v779
  %v1196 = vmul.f32 %v1188, %v784
  %v1197 = vmul.f32 %v1189, %v789
  %v1198 = vmul.f32 %v1190, %v794
  %v1199 = vmul.f32 %v1191, %v799
  %v1200 = vmul.f32 %v1192, %v804
  %v1201 = vmul.f32 %v1193, %v809
  %v1202 = vmul.f32 %v1194, %v814
  %v1203 = vsel %vm160, %v1195, 0.0
  %v1204 = vsel %vm160, %v1196, 0.0
  %v1205 = vadd.f32 %v1203, %v1204
  %v1206 = vsel %vm160, %v1197, 0.0
  %v1207 = vadd.f32 %v1205, %v1206
  %v1208 = vsel %vm160, %v1198, 0.0
  %v1209 = vadd.f32 %v1207, %v1208
  %v1210 = vrot.slane %v1209, 4
  %v1211 = vadd.f32 %v1209, %v1210
  %v1212 = vrot.slane %v1211, 2
  %v1213 = vadd.f32 %v1211, %v1212
  %v1214 = vrot.slane %v1213, 1
  %v1215 = vadd.f32 %v1213, %v1214
  %v1216 = vsel %vm160, %v1199, 0.0
  %v1217 = vsel %vm160, %v1200, 0.0
  %v1218 = vadd.f32 %v1216, %v1217
  %v1219 = vsel %vm160, %v1201, 0.0
  %v1220 = vadd.f32 %v1218, %v1219
  %v1221 = vsel %vm160, %v1202, 0.0
  %v1222 = vadd.f32 %v1220, %v1221
  %v1223 = vrot.slane %v1222, 4
  %v1224 = vadd.f32 %v1222, %v1223
  %v1225 = vrot.slane %v1224, 2
  %v1226 = vadd.f32 %v1224, %v1225
  %v1227 = vrot.slane %v1226, 1
  %v1228 = vadd.f32 %v1226, %v1227
  %v1229 = vadd.f32 %v1215, %v853
  %v1230 = vadd.f32 %v1228, %v854
  %v1233 = vrot.slane %v1230, 7
  %v1234 = vsel %vm412, %v1233, %v1229
  %s1236 = scalar_lea.vmem %s11, 6
  %1237 = vst.msk [vmem:[%s1236] sm:$0x3] %vm864, %v1234
  %1238 = vrot.lane.b32.xlu0 %v600, 118
  %v1239 = vpop.permute.xlu0 %1238
  %1240 = vrot.lane.b32.xlu0 %v603, 118
  %v1241 = vpop.permute.xlu0 %1240
  %1242 = vrot.lane.b32.xlu0 %v608, 118
  %v1243 = vpop.permute.xlu0 %1242
  %1244 = vrot.lane.b32.xlu0 %v611, 118
  %v1245 = vpop.permute.xlu0 %1244
  %1246 = vrot.lane.b32.xlu0 %v616, 118
  %v1247 = vpop.permute.xlu0 %1246
  %1248 = vrot.lane.b32.xlu0 %v619, 118
  %v1249 = vpop.permute.xlu0 %1248
  %1250 = vrot.lane.b32.xlu0 %v624, 118
  %v1251 = vpop.permute.xlu0 %1250
  %1252 = vrot.lane.b32.xlu0 %v627, 118
  %v1253 = vpop.permute.xlu0 %1252
  %1262 = vrot.lane.b32.xlu0 %v600, 6
  %v1263 = vpop.permute.xlu0 %1262
  %1264 = vrot.lane.b32.xlu0 %v603, 6
  %v1265 = vpop.permute.xlu0 %1264
  %1266 = vrot.lane.b32.xlu0 %v608, 6
  %v1267 = vpop.permute.xlu0 %1266
  %1268 = vrot.lane.b32.xlu0 %v611, 6
  %v1269 = vpop.permute.xlu0 %1268
  %1270 = vrot.lane.b32.xlu0 %v616, 6
  %v1271 = vpop.permute.xlu0 %1270
  %1272 = vrot.lane.b32.xlu0 %v619, 6
  %v1273 = vpop.permute.xlu0 %1272
  %1274 = vrot.lane.b32.xlu0 %v624, 6
  %v1275 = vpop.permute.xlu0 %1274
  %1276 = vrot.lane.b32.xlu0 %v627, 6
  %v1277 = vpop.permute.xlu0 %1276
  %vm1286 = vcmask 48128
  %v1287 = vsel %vm1286, %v1239, %v1263
  %v1288 = vsel %vm1286, %v1241, %v1265
  %v1289 = vsel %vm1286, %v1243, %v1267
  %v1290 = vsel %vm1286, %v1245, %v1269
  %v1291 = vsel %vm1286, %v1247, %v1271
  %v1292 = vsel %vm1286, %v1249, %v1273
  %v1293 = vsel %vm1286, %v1251, %v1275
  %v1294 = vsel %vm1286, %v1253, %v1277
  %v1295 = vadd.f32 %v495, %v1287
  %v1296 = vadd.f32 %v498, %v1288
  %v1297 = vadd.f32 %v503, %v1289
  %v1298 = vadd.f32 %v506, %v1290
  %v1299 = vadd.f32 %v511, %v1291
  %v1300 = vadd.f32 %v514, %v1292
  %v1301 = vadd.f32 %v519, %v1293
  %v1302 = vadd.f32 %v522, %v1294
  %v1303 = vadd.f32 %v1295, %v723
  %v1304 = vadd.f32 %v1296, %v728
  %v1305 = vadd.f32 %v1297, %v733
  %v1306 = vadd.f32 %v1298, %v738
  %v1307 = vadd.f32 %v1299, %v743
  %v1308 = vadd.f32 %v1300, %v748
  %v1309 = vadd.f32 %v1301, %v753
  %v1310 = vadd.f32 %v1302, %v758
  %v1311 = vmax.f32 %v1303, 0.0
  %v1312 = vmax.f32 %v1304, 0.0
  %v1313 = vmax.f32 %v1305, 0.0
  %v1314 = vmax.f32 %v1306, 0.0
  %v1315 = vmax.f32 %v1307, 0.0
  %v1316 = vmax.f32 %v1308, 0.0
  %v1317 = vmax.f32 %v1309, 0.0
  %v1318 = vmax.f32 %v1310, 0.0
  %v1319 = vmul.f32 %v1311, %v779
  %v1320 = vmul.f32 %v1312, %v784
  %v1321 = vmul.f32 %v1313, %v789
  %v1322 = vmul.f32 %v1314, %v794
  %v1323 = vmul.f32 %v1315, %v799
  %v1324 = vmul.f32 %v1316, %v804
  %v1325 = vmul.f32 %v1317, %v809
  %v1326 = vmul.f32 %v1318, %v814
  %v1327 = vsel %vm160, %v1319, 0.0
  %v1328 = vsel %vm160, %v1320, 0.0
  %v1329 = vadd.f32 %v1327, %v1328
  %v1330 = vsel %vm160, %v1321, 0.0
  %v1331 = vadd.f32 %v1329, %v1330
  %v1332 = vsel %vm160, %v1322, 0.0
  %v1333 = vadd.f32 %v1331, %v1332
  %v1334 = vrot.slane %v1333, 4
  %v1335 = vadd.f32 %v1333, %v1334
  %v1336 = vrot.slane %v1335, 2
  %v1337 = vadd.f32 %v1335, %v1336
  %v1338 = vrot.slane %v1337, 1
  %v1339 = vadd.f32 %v1337, %v1338
  %v1340 = vsel %vm160, %v1323, 0.0
  %v1341 = vsel %vm160, %v1324, 0.0
  %v1342 = vadd.f32 %v1340, %v1341
  %v1343 = vsel %vm160, %v1325, 0.0
  %v1344 = vadd.f32 %v1342, %v1343
  %v1345 = vsel %vm160, %v1326, 0.0
  %v1346 = vadd.f32 %v1344, %v1345
  %v1347 = vrot.slane %v1346, 4
  %v1348 = vadd.f32 %v1346, %v1347
  %v1349 = vrot.slane %v1348, 2
  %v1350 = vadd.f32 %v1348, %v1349
  %v1351 = vrot.slane %v1350, 1
  %v1352 = vadd.f32 %v1350, %v1351
  %v1353 = vadd.f32 %v1339, %v853
  %v1354 = vadd.f32 %v1352, %v854
  %v1357 = vrot.slane %v1354, 7
  %v1358 = vsel %vm412, %v1357, %v1353
  %s1360 = scalar_lea.vmem %s11, 8
  %1361 = vst.msk [vmem:[%s1360] sm:$0x3] %vm864, %v1358
  %1362 = vrot.lane.b32.xlu0 %v600, 116
  %v1363 = vpop.permute.xlu0 %1362
  %1364 = vrot.lane.b32.xlu0 %v603, 116
  %v1365 = vpop.permute.xlu0 %1364
  %1366 = vrot.lane.b32.xlu0 %v608, 116
  %v1367 = vpop.permute.xlu0 %1366
  %1368 = vrot.lane.b32.xlu0 %v611, 116
  %v1369 = vpop.permute.xlu0 %1368
  %1370 = vrot.lane.b32.xlu0 %v616, 116
  %v1371 = vpop.permute.xlu0 %1370
  %1372 = vrot.lane.b32.xlu0 %v619, 116
  %v1373 = vpop.permute.xlu0 %1372
  %1374 = vrot.lane.b32.xlu0 %v624, 116
  %v1375 = vpop.permute.xlu0 %1374
  %1376 = vrot.lane.b32.xlu0 %v627, 116
  %v1377 = vpop.permute.xlu0 %1376
  %1386 = vrot.lane.b32.xlu0 %v600, 4
  %v1387 = vpop.permute.xlu0 %1386
  %1388 = vrot.lane.b32.xlu0 %v603, 4
  %v1389 = vpop.permute.xlu0 %1388
  %1390 = vrot.lane.b32.xlu0 %v608, 4
  %v1391 = vpop.permute.xlu0 %1390
  %1392 = vrot.lane.b32.xlu0 %v611, 4
  %v1393 = vpop.permute.xlu0 %1392
  %1394 = vrot.lane.b32.xlu0 %v616, 4
  %v1395 = vpop.permute.xlu0 %1394
  %1396 = vrot.lane.b32.xlu0 %v619, 4
  %v1397 = vpop.permute.xlu0 %1396
  %1398 = vrot.lane.b32.xlu0 %v624, 4
  %v1399 = vpop.permute.xlu0 %1398
  %1400 = vrot.lane.b32.xlu0 %v627, 4
  %v1401 = vpop.permute.xlu0 %1400
  %vm1410 = vcmask 31744
  %v1411 = vsel %vm1410, %v1363, %v1387
  %v1412 = vsel %vm1410, %v1365, %v1389
  %v1413 = vsel %vm1410, %v1367, %v1391
  %v1414 = vsel %vm1410, %v1369, %v1393
  %v1415 = vsel %vm1410, %v1371, %v1395
  %v1416 = vsel %vm1410, %v1373, %v1397
  %v1417 = vsel %vm1410, %v1375, %v1399
  %v1418 = vsel %vm1410, %v1377, %v1401
  %v1419 = vadd.f32 %v495, %v1411
  %v1420 = vadd.f32 %v498, %v1412
  %v1421 = vadd.f32 %v503, %v1413
  %v1422 = vadd.f32 %v506, %v1414
  %v1423 = vadd.f32 %v511, %v1415
  %v1424 = vadd.f32 %v514, %v1416
  %v1425 = vadd.f32 %v519, %v1417
  %v1426 = vadd.f32 %v522, %v1418
  %v1427 = vadd.f32 %v1419, %v723
  %v1428 = vadd.f32 %v1420, %v728
  %v1429 = vadd.f32 %v1421, %v733
  %v1430 = vadd.f32 %v1422, %v738
  %v1431 = vadd.f32 %v1423, %v743
  %v1432 = vadd.f32 %v1424, %v748
  %v1433 = vadd.f32 %v1425, %v753
  %v1434 = vadd.f32 %v1426, %v758
  %v1435 = vmax.f32 %v1427, 0.0
  %v1436 = vmax.f32 %v1428, 0.0
  %v1437 = vmax.f32 %v1429, 0.0
  %v1438 = vmax.f32 %v1430, 0.0
  %v1439 = vmax.f32 %v1431, 0.0
  %v1440 = vmax.f32 %v1432, 0.0
  %v1441 = vmax.f32 %v1433, 0.0
  %v1442 = vmax.f32 %v1434, 0.0
  %v1443 = vmul.f32 %v1435, %v779
  %v1444 = vmul.f32 %v1436, %v784
  %v1445 = vmul.f32 %v1437, %v789
  %v1446 = vmul.f32 %v1438, %v794
  %v1447 = vmul.f32 %v1439, %v799
  %v1448 = vmul.f32 %v1440, %v804
  %v1449 = vmul.f32 %v1441, %v809
  %v1450 = vmul.f32 %v1442, %v814
  %v1451 = vsel %vm160, %v1443, 0.0
  %v1452 = vsel %vm160, %v1444, 0.0
  %v1453 = vadd.f32 %v1451, %v1452
  %v1454 = vsel %vm160, %v1445, 0.0
  %v1455 = vadd.f32 %v1453, %v1454
  %v1456 = vsel %vm160, %v1446, 0.0
  %v1457 = vadd.f32 %v1455, %v1456
  %v1458 = vrot.slane %v1457, 4
  %v1459 = vadd.f32 %v1457, %v1458
  %v1460 = vrot.slane %v1459, 2
  %v1461 = vadd.f32 %v1459, %v1460
  %v1462 = vrot.slane %v1461, 1
  %v1463 = vadd.f32 %v1461, %v1462
  %v1464 = vsel %vm160, %v1447, 0.0
  %v1465 = vsel %vm160, %v1448, 0.0
  %v1466 = vadd.f32 %v1464, %v1465
  %v1467 = vsel %vm160, %v1449, 0.0
  %v1468 = vadd.f32 %v1466, %v1467
  %v1469 = vsel %vm160, %v1450, 0.0
  %v1470 = vadd.f32 %v1468, %v1469
  %v1471 = vrot.slane %v1470, 4
  %v1472 = vadd.f32 %v1470, %v1471
  %v1473 = vrot.slane %v1472, 2
  %v1474 = vadd.f32 %v1472, %v1473
  %v1475 = vrot.slane %v1474, 1
  %v1476 = vadd.f32 %v1474, %v1475
  %v1477 = vadd.f32 %v1463, %v853
  %v1478 = vadd.f32 %v1476, %v854
  %v1481 = vrot.slane %v1478, 7
  %v1482 = vsel %vm412, %v1481, %v1477
  %s1484 = scalar_lea.vmem %s11, 10
  %1485 = vst.msk [vmem:[%s1484] sm:$0x3] %vm864, %v1482
  %1486 = vrot.lane.b32.xlu0 %v600, 114
  %v1487 = vpop.permute.xlu0 %1486
  %1488 = vrot.lane.b32.xlu0 %v603, 114
  %v1489 = vpop.permute.xlu0 %1488
  %1490 = vrot.lane.b32.xlu0 %v608, 114
  %v1491 = vpop.permute.xlu0 %1490
  %1492 = vrot.lane.b32.xlu0 %v611, 114
  %v1493 = vpop.permute.xlu0 %1492
  %1494 = vrot.lane.b32.xlu0 %v616, 114
  %v1495 = vpop.permute.xlu0 %1494
  %1496 = vrot.lane.b32.xlu0 %v619, 114
  %v1497 = vpop.permute.xlu0 %1496
  %1498 = vrot.lane.b32.xlu0 %v624, 114
  %v1499 = vpop.permute.xlu0 %1498
  %1500 = vrot.lane.b32.xlu0 %v627, 114
  %v1501 = vpop.permute.xlu0 %1500
  %1510 = vrot.lane.b32.xlu0 %v600, 2
  %v1511 = vpop.permute.xlu0 %1510
  %1512 = vrot.lane.b32.xlu0 %v603, 2
  %v1513 = vpop.permute.xlu0 %1512
  %1514 = vrot.lane.b32.xlu0 %v608, 2
  %v1515 = vpop.permute.xlu0 %1514
  %1516 = vrot.lane.b32.xlu0 %v611, 2
  %v1517 = vpop.permute.xlu0 %1516
  %1518 = vrot.lane.b32.xlu0 %v616, 2
  %v1519 = vpop.permute.xlu0 %1518
  %1520 = vrot.lane.b32.xlu0 %v619, 2
  %v1521 = vpop.permute.xlu0 %1520
  %1522 = vrot.lane.b32.xlu0 %v624, 2
  %v1523 = vpop.permute.xlu0 %1522
  %1524 = vrot.lane.b32.xlu0 %v627, 2
  %v1525 = vpop.permute.xlu0 %1524
  %vm1534 = vcmask 15360
  %v1535 = vsel %vm1534, %v1487, %v1511
  %v1536 = vsel %vm1534, %v1489, %v1513
  %v1537 = vsel %vm1534, %v1491, %v1515
  %v1538 = vsel %vm1534, %v1493, %v1517
  %v1539 = vsel %vm1534, %v1495, %v1519
  %v1540 = vsel %vm1534, %v1497, %v1521
  %v1541 = vsel %vm1534, %v1499, %v1523
  %v1542 = vsel %vm1534, %v1501, %v1525
  %v1543 = vadd.f32 %v495, %v1535
  %v1544 = vadd.f32 %v498, %v1536
  %v1545 = vadd.f32 %v503, %v1537
  %v1546 = vadd.f32 %v506, %v1538
  %v1547 = vadd.f32 %v511, %v1539
  %v1548 = vadd.f32 %v514, %v1540
  %v1549 = vadd.f32 %v519, %v1541
  %v1550 = vadd.f32 %v522, %v1542
  %v1551 = vadd.f32 %v1543, %v723
  %v1552 = vadd.f32 %v1544, %v728
  %v1553 = vadd.f32 %v1545, %v733
  %v1554 = vadd.f32 %v1546, %v738
  %v1555 = vadd.f32 %v1547, %v743
  %v1556 = vadd.f32 %v1548, %v748
  %v1557 = vadd.f32 %v1549, %v753
  %v1558 = vadd.f32 %v1550, %v758
  %v1559 = vmax.f32 %v1551, 0.0
  %v1560 = vmax.f32 %v1552, 0.0
  %v1561 = vmax.f32 %v1553, 0.0
  %v1562 = vmax.f32 %v1554, 0.0
  %v1563 = vmax.f32 %v1555, 0.0
  %v1564 = vmax.f32 %v1556, 0.0
  %v1565 = vmax.f32 %v1557, 0.0
  %v1566 = vmax.f32 %v1558, 0.0
  %v1567 = vmul.f32 %v1559, %v779
  %v1568 = vmul.f32 %v1560, %v784
  %v1569 = vmul.f32 %v1561, %v789
  %v1570 = vmul.f32 %v1562, %v794
  %v1571 = vmul.f32 %v1563, %v799
  %v1572 = vmul.f32 %v1564, %v804
  %v1573 = vmul.f32 %v1565, %v809
  %v1574 = vmul.f32 %v1566, %v814
  %v1575 = vsel %vm160, %v1567, 0.0
  %v1576 = vsel %vm160, %v1568, 0.0
  %v1577 = vadd.f32 %v1575, %v1576
  %v1578 = vsel %vm160, %v1569, 0.0
  %v1579 = vadd.f32 %v1577, %v1578
  %v1580 = vsel %vm160, %v1570, 0.0
  %v1581 = vadd.f32 %v1579, %v1580
  %v1582 = vrot.slane %v1581, 4
  %v1583 = vadd.f32 %v1581, %v1582
  %v1584 = vrot.slane %v1583, 2
  %v1585 = vadd.f32 %v1583, %v1584
  %v1586 = vrot.slane %v1585, 1
  %v1587 = vadd.f32 %v1585, %v1586
  %v1588 = vsel %vm160, %v1571, 0.0
  %v1589 = vsel %vm160, %v1572, 0.0
  %v1590 = vadd.f32 %v1588, %v1589
  %v1591 = vsel %vm160, %v1573, 0.0
  %v1592 = vadd.f32 %v1590, %v1591
  %v1593 = vsel %vm160, %v1574, 0.0
  %v1594 = vadd.f32 %v1592, %v1593
  %v1595 = vrot.slane %v1594, 4
  %v1596 = vadd.f32 %v1594, %v1595
  %v1597 = vrot.slane %v1596, 2
  %v1598 = vadd.f32 %v1596, %v1597
  %v1599 = vrot.slane %v1598, 1
  %v1600 = vadd.f32 %v1598, %v1599
  %v1601 = vadd.f32 %v1587, %v853
  %v1602 = vadd.f32 %v1600, %v854
  %v1605 = vrot.slane %v1602, 7
  %v1606 = vsel %vm412, %v1605, %v1601
  %s1608 = scalar_lea.vmem %s11, 12
  %1609 = vst.msk [vmem:[%s1608] sm:$0x3] %vm864, %v1606
  // Predicated region
  $region42: #{readout_forward.1} parent=0 // pred_check
    _
  $region43: #{readout_forward.1} parent=0 // pred_check_branch
    %1611 = sbr.rel (0) target = $region45
  $region44: #{readout_forward.1} parent=0 // pred_region
    _
  $region45: #{readout_forward.1} parent=0 // pred_fallthru
    _
  // Predicated region
  $region46: #{readout_forward.1} parent=0 // pred_check
    _
  $region47: #{readout_forward.1} parent=0 // pred_check_branch
    %1613 = sbr.rel (0) target = $region49
  $region48: #{readout_forward.1} parent=0 // pred_region
    _
  $region49: #{readout_forward.1} parent=0 // pred_fallthru
    _
  // Predicated region
  $region50: #{readout_forward.1} parent=0 // pred_check
    _
  $region51: #{readout_forward.1} parent=0 // pred_check_branch
    %1615 = sbr.rel (0) target = $region53
  $region52: #{readout_forward.1} parent=0 // pred_region
    _
  $region53: #{readout_forward.1} parent=0 // pred_fallthru
    _
  // Predicated region
  $region54: #{readout_forward.1} parent=0 // pred_check
    _
  $region55: #{readout_forward.1} parent=0 // pred_check_branch
    %1617 = sbr.rel (0) target = $region57
  $region56: #{readout_forward.1} parent=0 // pred_region
    _
  $region57: #{readout_forward.1} parent=0 // pred_fallthru
    _

</llo_original>
